<compile_context>
chip_gen: v5e
topology: v5e:2x2
jax: 0.10.0
libtpu: 0.0.40
codegen_flags: <defaults>
</compile_context>

<pallas_src>
import numpy as np
import jax
import jax.numpy as jnp
from jax.experimental import pallas as pl
from jax.experimental.pallas import tpu as pltpu


# ----------------------------- Pallas kernel ------------------------------ #
def perframe_kernel(x_ref,
                    w1, b1, w2, b2, w3, b3, w4, b4,
                    wf1, bf1, wf2, bf2, wf3, bf3,
                    o_ref):
    def dense(h, w_r, b_r):
        # bf16 MXU operands, f32 accumulation, f32 bias add.
        return jnp.dot(h.astype(w_r.dtype), w_r[...],
                       preferred_element_type=jnp.float32) + b_r[...]

    def leaky(h, slope):
        # max(h, s*h) == LeakyReLU(s) for 0 < s < 1.
        return jnp.maximum(h, slope * h)

    h = x_ref[...]                       # (tile_n, 464) f32 straight from HBM
    h = leaky(dense(h, w1, b1), 0.02)    # conv1 as matmul -> (tile_n, 8*32)
    h = leaky(dense(h, w2, b2), 0.02)    # conv2           -> (tile_n, 4*32)
    h = leaky(dense(h, w3, b3), 0.2)     # conv3           -> (tile_n, 2*64)
    h = leaky(dense(h, w4, b4), 0.2)     # conv4           -> (tile_n, 64)
    h = leaky(dense(h, wf1, bf1), 0.02)  # fc1             -> (tile_n, 128)
    h = leaky(dense(h, wf2, bf2), 0.02)  # fc2             -> (tile_n, 64)
    h = jnp.tanh(dense(h, wf3, bf3))     # fc3 + tanh      -> (tile_n, 32)
    o_ref[...] = h.astype(o_ref.dtype)


# ------------------------------- glue code -------------------------------- #
def _round_up(x, m):
    return ((x + m - 1) // m) * m


def conv_to_dense(w, b, l_in, in_channel_major=False):
    """Turn a (Cout, Cin, 3, 1) stride-(2,1) pad-(1,0) conv into a dense matmul.

    Output columns are always position-major / channel-minor (p*Cout + c_out).
    Input rows are position-major (l*Cin + c) by default, or channel-major
    (c*l_in + l) when `in_channel_major` (used for conv1 so that a plain
    x.reshape(N, C*L) feeds the kernel with no wrapper transpose)."""
    cout, cin, k_sz, _ = w.shape
    l_out = (l_in + 2 - k_sz) // 2 + 1          # pad=1, stride=2
    w_np = np.asarray(w, dtype=np.float32)
    wd = np.zeros((l_in * cin, l_out * cout), dtype=np.float32)
    for p in range(l_out):
        for k in range(k_sz):
            li = 2 * p + k - 1                   # padding = 1
            if 0 <= li < l_in:
                blk = w_np[:, :, k, 0].T         # (cin, cout)
                if in_channel_major:
                    wd[li::l_in, p * cout:(p + 1) * cout] = blk     # rows c*l_in + li
                else:
                    wd[li * cin:(li + 1) * cin, p * cout:(p + 1) * cout] = blk
    bd = np.tile(np.asarray(b, dtype=np.float32), l_out)[None, :]
    return wd, bd, l_out


def init_params(key):
    p = {}
    conv_defs = [("conv1", 29, 32), ("conv2", 32, 32), ("conv3", 32, 64), ("conv4", 64, 64)]
    fc_defs = [("fc1", 64, 128), ("fc2", 128, 64), ("fc3", 64, 32)]
    ks = jax.random.split(key, len(conv_defs) + len(fc_defs))
    i = 0
    for name, cin, cout in conv_defs:
        kw, kb = jax.random.split(ks[i]); i += 1
        bound = 1.0 / np.sqrt(cin * 3)
        p[name + "_w"] = jax.random.uniform(kw, (cout, cin, 3, 1), jnp.float32, -bound, bound)
        p[name + "_b"] = jax.random.uniform(kb, (cout,), jnp.float32, -bound, bound)
    for name, fin, fout in fc_defs:
        kw, kb = jax.random.split(ks[i]); i += 1
        bound = 1.0 / np.sqrt(fin)
        p[name + "_w"] = jax.random.uniform(kw, (fout, fin), jnp.float32, -bound, bound)
        p[name + "_b"] = jax.random.uniform(kb, (fout,), jnp.float32, -bound, bound)
    return p


def perframe_exp_pallas(x, params, tile_n=1024):
    """x: (B, T, 29, L) float32 -> (B*T, 32) float32 (matches PyTorch output)."""
    B, T, C, L = x.shape
    N = B * T
    feat = C * L                                   # 29*16 = 464

    # Free (bitcast) reshape; no cast / pad / extra HBM pass in the wrapper.
    x_flat = x.reshape(N, feat)

    # Tile selection: large tiles for big N (amortize per-step overhead, long MXU
    # M passes), but aim for >= 2 grid steps so v7x can use both TensorCores.
    tile_n = int(max(8, min(tile_n, _round_up(pl.cdiv(N, 2), 8))))
    grid = (pl.cdiv(N, tile_n),)                   # partial last block handled by Pallas

    # Build dense-matmul weights at trace time (numpy); bf16 weights, f32 biases.
    mats = []
    l_cur = L
    first = True
    for name in ("conv1", "conv2", "conv3", "conv4"):
        wd, bd, l_cur = conv_to_dense(params[name + "_w"], params[name + "_b"],
                                      l_cur, in_channel_major=first)
        first = False
        mats += [jnp.asarray(wd, dtype=jnp.bfloat16),
                 jnp.asarray(bd, dtype=jnp.float32)]
    for name in ("fc1", "fc2", "fc3"):
        mats += [jnp.asarray(params[name + "_w"]).T.astype(jnp.bfloat16),
                 jnp.asarray(params[name + "_b"], dtype=jnp.float32)[None, :]]

    in_specs = [pl.BlockSpec((tile_n, feat), lambda i: (i, 0))]
    in_specs += [pl.BlockSpec(m.shape, lambda i: (0, 0)) for m in mats]
    out_spec = pl.BlockSpec((tile_n, 32), lambda i: (i, 0))

    # Advisory cost hint so XLA schedules surrounding ops around the custom call.
    layer_kn = [(feat, 256), (256, 128), (128, 128), (128, 64),
                (64, 128), (128, 64), (64, 32)]
    flops = 2 * N * sum(k * n for k, n in layer_kn)
    weight_bytes = sum(int(m.size) * m.dtype.itemsize for m in mats)
    cost = pl.CostEstimate(flops=flops,
                           transcendentals=N * 32,
                           bytes_accessed=N * feat * 4 + N * 32 * 4 + weight_bytes)

    out = pl.pallas_call(
        perframe_kernel,
        out_shape=jax.ShapeDtypeStruct((N, 32), jnp.float32),
        grid=grid,
        in_specs=in_specs,
        out_specs=out_spec,
        compiler_params=pltpu.CompilerParams(
            dimension_semantics=("parallel",),
            vmem_limit_bytes=32 * 1024 * 1024),     # safe on v7x's 64 MiB VMEM too
        cost_estimate=cost,
    )(x_flat, *mats)
    return out


# -------------------------- pure-JAX reference ----------------------------- #
def ref_forward(x, params):
    B, T, C, L = x.shape
    ds = x.reshape(B * T, C, L)[:, :, :, None]          # NCHW, W=1

    def leaky(h, s):
        return jnp.where(h >= 0, h, s * h)

    def conv(h, name):
        w = params[name + "_w"]
        b = params[name + "_b"]
        y = jax.lax.conv_general_dilated(
            h, w, window_strides=(2, 1), padding=((1, 1), (0, 0)),
            dimension_numbers=("NCHW", "OIHW", "NCHW"))
        return y + b[None, :, None, None]

    ds = leaky(conv(ds, "conv1"), 0.02)
    ds = leaky(conv(ds, "conv2"), 0.02)
    ds = leaky(conv(ds, "conv3"), 0.2)
    ds = leaky(conv(ds, "conv4"), 0.2)
    ds = ds.reshape(B * T, 64)                           # squeeze

    def lin(h, name):
        return h @ params[name + "_w"].T + params[name + "_b"]

    ds = leaky(lin(ds, "fc1"), 0.02)
    ds = leaky(lin(ds, "fc2"), 0.02)
    return jnp.tanh(lin(ds, "fc3"))


# --------------------------------- main ------------------------------------ #
if __name__ == "__main__":
    key = jax.random.PRNGKey(0)
    kx, kp = jax.random.split(key)
    B, T, C, L = 2, 8, 29, 16                  # DeepSpeech-style features (B, T, 29, 16)
    x = jax.random.normal(kx, (B, T, C, L), jnp.float32)
    params = init_params(kp)

    out = jax.block_until_ready(perframe_exp_pallas(x, params))
    assert out.shape == (B * T, 32)

    ref = np.asarray(ref_forward(x, params))
    # bf16 matmul operands (f32 accumulation) -> small numerical difference vs f32 ref.
    np.testing.assert_allclose(np.asarray(out), ref, rtol=2e-2, atol=2e-3)
    print("KERNEL_OK")
</pallas_src>

<mosaic_0001>
module attributes {stable_mosaic.version = 11 : i64} {
  func.func @perframe_kernel(%arg0: i32, %arg1: memref<8x464xf32, #tpu.memory_space<vmem>>, %arg2: memref<464x256xbf16, #tpu.memory_space<vmem>>, %arg3: memref<1x256xf32, #tpu.memory_space<vmem>>, %arg4: memref<256x128xbf16, #tpu.memory_space<vmem>>, %arg5: memref<1x128xf32, #tpu.memory_space<vmem>>, %arg6: memref<128x128xbf16, #tpu.memory_space<vmem>>, %arg7: memref<1x128xf32, #tpu.memory_space<vmem>>, %arg8: memref<128x64xbf16, #tpu.memory_space<vmem>>, %arg9: memref<1x64xf32, #tpu.memory_space<vmem>>, %arg10: memref<64x128xbf16, #tpu.memory_space<vmem>>, %arg11: memref<1x128xf32, #tpu.memory_space<vmem>>, %arg12: memref<128x64xbf16, #tpu.memory_space<vmem>>, %arg13: memref<1x64xf32, #tpu.memory_space<vmem>>, %arg14: memref<64x32xbf16, #tpu.memory_space<vmem>>, %arg15: memref<1x32xf32, #tpu.memory_space<vmem>>, %arg16: memref<8x32xf32, #tpu.memory_space<vmem>>) attributes {dimension_semantics = [#tpu.dimension_semantics<parallel>], iteration_bounds = array<i64: 2>, scalar_prefetch = 0 : i64, scratch_operands = 0 : i64, tpu.core_type = #tpu.core_type<tc>, window_params = [{transform_indices = @transform_0, window_bounds = array<i64: 8, 464>}, {pipeline_mode = #tpu.pipeline_mode<synchronous>, transform_indices = @transform_1, window_bounds = array<i64: 464, 256>}, {pipeline_mode = #tpu.pipeline_mode<synchronous>, transform_indices = @transform_2, window_bounds = array<i64: 1, 256>}, {pipeline_mode = #tpu.pipeline_mode<synchronous>, transform_indices = @transform_3, window_bounds = array<i64: 256, 128>}, {pipeline_mode = #tpu.pipeline_mode<synchronous>, transform_indices = @transform_4, window_bounds = array<i64: 1, 128>}, {pipeline_mode = #tpu.pipeline_mode<synchronous>, transform_indices = @transform_5, window_bounds = array<i64: 128, 128>}, {pipeline_mode = #tpu.pipeline_mode<synchronous>, transform_indices = @transform_6, window_bounds = array<i64: 1, 128>}, {pipeline_mode = #tpu.pipeline_mode<synchronous>, transform_indices = @transform_7, window_bounds = array<i64: 128, 64>}, {pipeline_mode = #tpu.pipeline_mode<synchronous>, transform_indices = @transform_8, window_bounds = array<i64: 1, 64>}, {pipeline_mode = #tpu.pipeline_mode<synchronous>, transform_indices = @transform_9, window_bounds = array<i64: 64, 128>}, {pipeline_mode = #tpu.pipeline_mode<synchronous>, transform_indices = @transform_10, window_bounds = array<i64: 1, 128>}, {pipeline_mode = #tpu.pipeline_mode<synchronous>, transform_indices = @transform_11, window_bounds = array<i64: 128, 64>}, {pipeline_mode = #tpu.pipeline_mode<synchronous>, transform_indices = @transform_12, window_bounds = array<i64: 1, 64>}, {pipeline_mode = #tpu.pipeline_mode<synchronous>, transform_indices = @transform_13, window_bounds = array<i64: 64, 32>}, {pipeline_mode = #tpu.pipeline_mode<synchronous>, transform_indices = @transform_14, window_bounds = array<i64: 1, 32>}, {transform_indices = @transform_15, window_bounds = array<i64: 8, 32>}]} {
    %c0 = arith.constant 0 : index
    %c0_0 = arith.constant 0 : index
    %0 = vector.load %arg1[%c0, %c0_0] : memref<8x464xf32, #tpu.memory_space<vmem>>, vector<8x464xf32>
    %1 = arith.truncf %0 : vector<8x464xf32> to vector<8x464xbf16>
    %c0_1 = arith.constant 0 : index
    %c0_2 = arith.constant 0 : index
    %2 = vector.load %arg2[%c0_1, %c0_2] : memref<464x256xbf16, #tpu.memory_space<vmem>>, vector<464x256xbf16>
    %cst = arith.constant dense<0.000000e+00> : vector<8x256xf32>
    %3 = tpu.matmul %1, %2, %cst {dimension_numbers = #tpu.dot_dimension_numbers<[1], [0], [0], [1], [0, 0, 1, 1], [], []>} : vector<8x464xbf16>, vector<464x256xbf16>, vector<8x256xf32> -> vector<8x256xf32>
    %c0_3 = arith.constant 0 : index
    %c0_4 = arith.constant 0 : index
    %4 = vector.load %arg3[%c0_3, %c0_4] : memref<1x256xf32, #tpu.memory_space<vmem>>, vector<1x256xf32>
    %5 = vector.broadcast %4 : vector<1x256xf32> to vector<8x256xf32>
    %6 = arith.addf %3, %5 : vector<8x256xf32>
    %cst_5 = arith.constant 2.000000e-02 : f32
    %7 = vector.broadcast %cst_5 : f32 to vector<8x256xf32>
    %8 = arith.mulf %7, %6 : vector<8x256xf32>
    %9 = arith.maximumf %6, %8 : vector<8x256xf32>
    %10 = arith.truncf %9 : vector<8x256xf32> to vector<8x256xbf16>
    %c0_6 = arith.constant 0 : index
    %c0_7 = arith.constant 0 : index
    %11 = vector.load %arg4[%c0_6, %c0_7] : memref<256x128xbf16, #tpu.memory_space<vmem>>, vector<256x128xbf16>
    %cst_8 = arith.constant dense<0.000000e+00> : vector<8x128xf32>
    %12 = tpu.matmul %10, %11, %cst_8 {dimension_numbers = #tpu.dot_dimension_numbers<[1], [0], [0], [1], [0, 0, 1, 1], [], []>} : vector<8x256xbf16>, vector<256x128xbf16>, vector<8x128xf32> -> vector<8x128xf32>
    %c0_9 = arith.constant 0 : index
    %c0_10 = arith.constant 0 : index
    %13 = vector.load %arg5[%c0_9, %c0_10] : memref<1x128xf32, #tpu.memory_space<vmem>>, vector<1x128xf32>
    %14 = vector.broadcast %13 : vector<1x128xf32> to vector<8x128xf32>
    %15 = arith.addf %12, %14 : vector<8x128xf32>
    %cst_11 = arith.constant 2.000000e-02 : f32
    %16 = vector.broadcast %cst_11 : f32 to vector<8x128xf32>
    %17 = arith.mulf %16, %15 : vector<8x128xf32>
    %18 = arith.maximumf %15, %17 : vector<8x128xf32>
    %19 = arith.truncf %18 : vector<8x128xf32> to vector<8x128xbf16>
    %c0_12 = arith.constant 0 : index
    %c0_13 = arith.constant 0 : index
    %20 = vector.load %arg6[%c0_12, %c0_13] : memref<128x128xbf16, #tpu.memory_space<vmem>>, vector<128x128xbf16>
    %cst_14 = arith.constant dense<0.000000e+00> : vector<8x128xf32>
    %21 = tpu.matmul %19, %20, %cst_14 {dimension_numbers = #tpu.dot_dimension_numbers<[1], [0], [0], [1], [0, 0, 1, 1], [], []>} : vector<8x128xbf16>, vector<128x128xbf16>, vector<8x128xf32> -> vector<8x128xf32>
    %c0_15 = arith.constant 0 : index
    %c0_16 = arith.constant 0 : index
    %22 = vector.load %arg7[%c0_15, %c0_16] : memref<1x128xf32, #tpu.memory_space<vmem>>, vector<1x128xf32>
    %23 = vector.broadcast %22 : vector<1x128xf32> to vector<8x128xf32>
    %24 = arith.addf %21, %23 : vector<8x128xf32>
    %cst_17 = arith.constant 2.000000e-01 : f32
    %25 = vector.broadcast %cst_17 : f32 to vector<8x128xf32>
    %26 = arith.mulf %25, %24 : vector<8x128xf32>
    %27 = arith.maximumf %24, %26 : vector<8x128xf32>
    %28 = arith.truncf %27 : vector<8x128xf32> to vector<8x128xbf16>
    %c0_18 = arith.constant 0 : index
    %c0_19 = arith.constant 0 : index
    %29 = vector.load %arg8[%c0_18, %c0_19] : memref<128x64xbf16, #tpu.memory_space<vmem>>, vector<128x64xbf16>
    %cst_20 = arith.constant dense<0.000000e+00> : vector<8x64xf32>
    %30 = tpu.matmul %28, %29, %cst_20 {dimension_numbers = #tpu.dot_dimension_numbers<[1], [0], [0], [1], [0, 0, 1, 1], [], []>} : vector<8x128xbf16>, vector<128x64xbf16>, vector<8x64xf32> -> vector<8x64xf32>
    %c0_21 = arith.constant 0 : index
    %c0_22 = arith.constant 0 : index
    %31 = vector.load %arg9[%c0_21, %c0_22] : memref<1x64xf32, #tpu.memory_space<vmem>>, vector<1x64xf32>
    %32 = vector.broadcast %31 : vector<1x64xf32> to vector<8x64xf32>
    %33 = arith.addf %30, %32 : vector<8x64xf32>
    %cst_23 = arith.constant 2.000000e-01 : f32
    %34 = vector.broadcast %cst_23 : f32 to vector<8x64xf32>
    %35 = arith.mulf %34, %33 : vector<8x64xf32>
    %36 = arith.maximumf %33, %35 : vector<8x64xf32>
    %37 = arith.truncf %36 : vector<8x64xf32> to vector<8x64xbf16>
    %c0_24 = arith.constant 0 : index
    %c0_25 = arith.constant 0 : index
    %38 = vector.load %arg10[%c0_24, %c0_25] : memref<64x128xbf16, #tpu.memory_space<vmem>>, vector<64x128xbf16>
    %cst_26 = arith.constant dense<0.000000e+00> : vector<8x128xf32>
    %39 = tpu.matmul %37, %38, %cst_26 {dimension_numbers = #tpu.dot_dimension_numbers<[1], [0], [0], [1], [0, 0, 1, 1], [], []>} : vector<8x64xbf16>, vector<64x128xbf16>, vector<8x128xf32> -> vector<8x128xf32>
    %c0_27 = arith.constant 0 : index
    %c0_28 = arith.constant 0 : index
    %40 = vector.load %arg11[%c0_27, %c0_28] : memref<1x128xf32, #tpu.memory_space<vmem>>, vector<1x128xf32>
    %41 = vector.broadcast %40 : vector<1x128xf32> to vector<8x128xf32>
    %42 = arith.addf %39, %41 : vector<8x128xf32>
    %cst_29 = arith.constant 2.000000e-02 : f32
    %43 = vector.broadcast %cst_29 : f32 to vector<8x128xf32>
    %44 = arith.mulf %43, %42 : vector<8x128xf32>
    %45 = arith.maximumf %42, %44 : vector<8x128xf32>
    %46 = arith.truncf %45 : vector<8x128xf32> to vector<8x128xbf16>
    %c0_30 = arith.constant 0 : index
    %c0_31 = arith.constant 0 : index
    %47 = vector.load %arg12[%c0_30, %c0_31] : memref<128x64xbf16, #tpu.memory_space<vmem>>, vector<128x64xbf16>
    %cst_32 = arith.constant dense<0.000000e+00> : vector<8x64xf32>
    %48 = tpu.matmul %46, %47, %cst_32 {dimension_numbers = #tpu.dot_dimension_numbers<[1], [0], [0], [1], [0, 0, 1, 1], [], []>} : vector<8x128xbf16>, vector<128x64xbf16>, vector<8x64xf32> -> vector<8x64xf32>
    %c0_33 = arith.constant 0 : index
    %c0_34 = arith.constant 0 : index
    %49 = vector.load %arg13[%c0_33, %c0_34] : memref<1x64xf32, #tpu.memory_space<vmem>>, vector<1x64xf32>
    %50 = vector.broadcast %49 : vector<1x64xf32> to vector<8x64xf32>
    %51 = arith.addf %48, %50 : vector<8x64xf32>
    %cst_35 = arith.constant 2.000000e-02 : f32
    %52 = vector.broadcast %cst_35 : f32 to vector<8x64xf32>
    %53 = arith.mulf %52, %51 : vector<8x64xf32>
    %54 = arith.maximumf %51, %53 : vector<8x64xf32>
    %55 = arith.truncf %54 : vector<8x64xf32> to vector<8x64xbf16>
    %c0_36 = arith.constant 0 : index
    %c0_37 = arith.constant 0 : index
    %56 = vector.load %arg14[%c0_36, %c0_37] : memref<64x32xbf16, #tpu.memory_space<vmem>>, vector<64x32xbf16>
    %cst_38 = arith.constant dense<0.000000e+00> : vector<8x32xf32>
    %57 = tpu.matmul %55, %56, %cst_38 {dimension_numbers = #tpu.dot_dimension_numbers<[1], [0], [0], [1], [0, 0, 1, 1], [], []>} : vector<8x64xbf16>, vector<64x32xbf16>, vector<8x32xf32> -> vector<8x32xf32>
    %c0_39 = arith.constant 0 : index
    %c0_40 = arith.constant 0 : index
    %58 = vector.load %arg15[%c0_39, %c0_40] : memref<1x32xf32, #tpu.memory_space<vmem>>, vector<1x32xf32>
    %59 = vector.broadcast %58 : vector<1x32xf32> to vector<8x32xf32>
    %60 = arith.addf %57, %59 : vector<8x32xf32>
    %61 = math.tanh %60 : vector<8x32xf32>
    %c0_41 = arith.constant 0 : index
    %c0_42 = arith.constant 0 : index
    %62 = vector.load %arg16[%c0_41, %c0_42] : memref<8x32xf32, #tpu.memory_space<vmem>>, vector<8x32xf32>
    tpu.vector_store %arg16[%c0_41, %c0_42], %61 {strides = array<i32>} : memref<8x32xf32, #tpu.memory_space<vmem>>, vector<8x32xf32>,
    return
  }
  func.func @transform_0(%arg0: i32) -> (i32, i32) {
    %c0_i32 = arith.constant 0 : i32
    %c0_i32_0 = arith.constant 0 : i32
    return %arg0, %c0_i32 : i32, i32
  }
  func.func @transform_1(%arg0: i32) -> (i32, i32) {
    %c0_i32 = arith.constant 0 : i32
    %c0_i32_0 = arith.constant 0 : i32
    %c0_i32_1 = arith.constant 0 : i32
    return %c0_i32, %c0_i32_0 : i32, i32
  }
  func.func @transform_2(%arg0: i32) -> (i32, i32) {
    %c0_i32 = arith.constant 0 : i32
    %c0_i32_0 = arith.constant 0 : i32
    %c0_i32_1 = arith.constant 0 : i32
    return %c0_i32, %c0_i32_0 : i32, i32
  }
  func.func @transform_3(%arg0: i32) -> (i32, i32) {
    %c0_i32 = arith.constant 0 : i32
    %c0_i32_0 = arith.constant 0 : i32
    %c0_i32_1 = arith.constant 0 : i32
    return %c0_i32, %c0_i32_0 : i32, i32
  }
  func.func @transform_4(%arg0: i32) -> (i32, i32) {
    %c0_i32 = arith.constant 0 : i32
    %c0_i32_0 = arith.constant 0 : i32
    %c0_i32_1 = arith.constant 0 : i32
    return %c0_i32, %c0_i32_0 : i32, i32
  }
  func.func @transform_5(%arg0: i32) -> (i32, i32) {
    %c0_i32 = arith.constant 0 : i32
    %c0_i32_0 = arith.constant 0 : i32
    %c0_i32_1 = arith.constant 0 : i32
    return %c0_i32, %c0_i32_0 : i32, i32
  }
  func.func @transform_6(%arg0: i32) -> (i32, i32) {
    %c0_i32 = arith.constant 0 : i32
    %c0_i32_0 = arith.constant 0 : i32
    %c0_i32_1 = arith.constant 0 : i32
    return %c0_i32, %c0_i32_0 : i32, i32
  }
  func.func @transform_7(%arg0: i32) -> (i32, i32) {
    %c0_i32 = arith.constant 0 : i32
    %c0_i32_0 = arith.constant 0 : i32
    %c0_i32_1 = arith.constant 0 : i32
    return %c0_i32, %c0_i32_0 : i32, i32
  }
  func.func @transform_8(%arg0: i32) -> (i32, i32) {
    %c0_i32 = arith.constant 0 : i32
    %c0_i32_0 = arith.constant 0 : i32
    %c0_i32_1 = arith.constant 0 : i32
    return %c0_i32, %c0_i32_0 : i32, i32
  }
  func.func @transform_9(%arg0: i32) -> (i32, i32) {
    %c0_i32 = arith.constant 0 : i32
    %c0_i32_0 = arith.constant 0 : i32
    %c0_i32_1 = arith.constant 0 : i32
    return %c0_i32, %c0_i32_0 : i32, i32
  }
  func.func @transform_10(%arg0: i32) -> (i32, i32) {
    %c0_i32 = arith.constant 0 : i32
    %c0_i32_0 = arith.constant 0 : i32
    %c0_i32_1 = arith.constant 0 : i32
    return %c0_i32, %c0_i32_0 : i32, i32
  }
  func.func @transform_11(%arg0: i32) -> (i32, i32) {
    %c0_i32 = arith.constant 0 : i32
    %c0_i32_0 = arith.constant 0 : i32
    %c0_i32_1 = arith.constant 0 : i32
    return %c0_i32, %c0_i32_0 : i32, i32
  }
  func.func @transform_12(%arg0: i32) -> (i32, i32) {
    %c0_i32 = arith.constant 0 : i32
    %c0_i32_0 = arith.constant 0 : i32
    %c0_i32_1 = arith.constant 0 : i32
    return %c0_i32, %c0_i32_0 : i32, i32
  }
  func.func @transform_13(%arg0: i32) -> (i32, i32) {
    %c0_i32 = arith.constant 0 : i32
    %c0_i32_0 = arith.constant 0 : i32
    %c0_i32_1 = arith.constant 0 : i32
    return %c0_i32, %c0_i32_0 : i32, i32
  }
  func.func @transform_14(%arg0: i32) -> (i32, i32) {
    %c0_i32 = arith.constant 0 : i32
    %c0_i32_0 = arith.constant 0 : i32
    %c0_i32_1 = arith.constant 0 : i32
    return %c0_i32, %c0_i32_0 : i32, i32
  }
  func.func @transform_15(%arg0: i32) -> (i32, i32) {
    %c0_i32 = arith.constant 0 : i32
    %c0_i32_0 = arith.constant 0 : i32
    return %arg0, %c0_i32 : i32, i32
  }
}

</mosaic_0001>

<llo_original>
// kernel: tpu_custom_call.1
$region0: #{tpu_custom_call.1}
  #allocation0 [shape = 'u32[]', space=smem, size = 0x4, offset = 0x4, fixed_abs, tag = 'smem constant byte address 0x4 - core index']
  #allocation1 [shape = 'u32[72,128]{1,0:T(1,128)}', space=vmem, size = 0x9000, scoped, tag = 'internal scratch']
  %s0 = inlined_call_operand.vmem [shape: f32[16,464], index: 0, kind: input, shape index: {}]
  %s1 = inlined_call_operand.hbm [shape: bf16[464,256], index: 1, kind: input, shape index: {}]
  %s2 = inlined_call_operand.vmem [shape: f32[1,256], index: 2, kind: input, shape index: {}]
  %s3 = inlined_call_operand.vmem [shape: bf16[256,128], index: 3, kind: input, shape index: {}]
  %s4 = inlined_call_operand.vmem [shape: f32[1,128], index: 4, kind: input, shape index: {}]
  %s5 = inlined_call_operand.hbm [shape: bf16[128,128], index: 5, kind: input, shape index: {}]
  %s6 = inlined_call_operand.vmem [shape: f32[1,128], index: 6, kind: input, shape index: {}]
  %s7 = inlined_call_operand.vmem [shape: bf16[128,64], index: 7, kind: input, shape index: {}]
  %s8 = inlined_call_operand.vmem [shape: f32[1,64], index: 8, kind: input, shape index: {}]
  %s9 = inlined_call_operand.vmem [shape: bf16[64,128], index: 9, kind: input, shape index: {}]
  %s10 = inlined_call_operand.vmem [shape: f32[1,128], index: 10, kind: input, shape index: {}]
  %s11 = inlined_call_operand.vmem [shape: bf16[128,64], index: 11, kind: input, shape index: {}]
  %s12 = inlined_call_operand.vmem [shape: f32[1,64], index: 12, kind: input, shape index: {}]
  %s13 = inlined_call_operand.vmem [shape: bf16[64,32], index: 13, kind: input, shape index: {}]
  %s14 = inlined_call_operand.vmem [shape: f32[1,32], index: 14, kind: input, shape index: {}]
  %s15 = inlined_call_operand.hbm [shape: f32[16,32], index: 15, kind: output, shape index: {}]
  %s16 = sld [smem:[#allocation0]]
  $region101: #{tpu_custom_call.1} parent=0
    _
  %s18 = ssub.s32 1, %s16
  %s19 = scalar_select 0, %s18, %s16
  $region1: #{tpu_custom_call.1} parent=0
    #allocation2 [shape = 'u8[237568]{0}', space=vmem, size = 0x3a000, scoped, tag = 'input window, operand 1, single buffered']
    #allocation3 [shape = 's32[2]{0}', space=sflag, size = 0x8, scoped, tag = 'scoped memory for tpu_custom_call.1']
    #allocation4 [shape = 's32[2]{0}', space=sflag, size = 0x8, scoped, tag = 'scoped memory for tpu_custom_call.1']
    #allocation5 [shape = 'u8[32768]{0}', space=vmem, size = 0x8000, scoped, tag = 'input window, operand 5, single buffered']
    #allocation6 [shape = 's32[1]{0}', space=sflag, size = 0x4, scoped, tag = 'scoped memory for tpu_custom_call.1']
    #allocation7 [shape = 'u8[8192]{0}', space=vmem, size = 0x2000, scoped, tag = 'output window, operand 0']
    %20 = vsyncpa [#allocation3], 0
    %21 = vsyncpa [#allocation6], 0
    %22 = vsyncpa [#allocation4], 0
    %s23 = scalar_lea.sflag [#allocation4], 1
    %24 = vsyncpa %s23, 0
    loop: start=0, step=1, limit=4
    $region2: #{tpu_custom_call.1} parent=1 // loop_pre_header
      _
    $region3: #{tpu_custom_call.1} parent=1 // loop_header
      %s26 = sphi 0, %s30
      %p27 = scmp.ge.s32.totalorder %s26, 4
      %s36 = sphi 0, %s38
      %s39 = sphi 0, %s36
      %s40 = sphi 0, %s39
      %s56 = sphi 0, %s40
      %s60 = sphi 0, %s60
      %s62 = sphi 0, %s60
      %s63 = sphi 0, %s62
      %s77 = sphi 0, %s63
      %s81 = sphi 0, %s81
      %s83 = sphi 0, %s81
      %s84 = sphi 0, %s83
      %s98 = sphi 0, %s84
      %s102 = sphi 0, %s102
      %s104 = sphi 0, %s102
      %s105 = sphi 0, %s104
      %s119 = sphi 0, %s105
      %s123 = sphi 0, %s123
      %s125 = sphi 0, %s123
      %s126 = sphi 0, %s125
      %s140 = sphi 0, %s126
      %s144 = sphi 0, %s144
      %s146 = sphi 0, %s144
      %s147 = sphi 0, %s146
      %s161 = sphi 0, %s147
      %s165 = sphi 0, %s165
      %s167 = sphi 0, %s165
      %s168 = sphi 0, %s167
      %s182 = sphi 0, %s168
      %s186 = sphi 0, %s186
      %s188 = sphi 0, %s186
      %s189 = sphi 0, %s188
      %s203 = sphi 0, %s189
      %s207 = sphi 0, %s207
      %s209 = sphi 0, %s207
      %s210 = sphi 0, %s209
      %s224 = sphi 0, %s210
      %s228 = sphi 0, %s228
      %s230 = sphi 0, %s228
      %s231 = sphi 0, %s230
      %s245 = sphi 0, %s231
      %s249 = sphi 0, %s249
      %s251 = sphi 0, %s249
      %s252 = sphi 0, %s251
      %s266 = sphi 0, %s252
      %s270 = sphi 0, %s270
      %s272 = sphi 0, %s270
      %s273 = sphi 0, %s272
      %s287 = sphi 0, %s273
      %s291 = sphi 0, %s291
      %s293 = sphi 0, %s291
      %s294 = sphi 0, %s293
      %s308 = sphi 0, %s294
      %s312 = sphi 0, %s312
      %s314 = sphi 0, %s312
      %s315 = sphi 0, %s314
      %s329 = sphi 0, %s315
      %s333 = sphi 0, %s333
      %s335 = sphi 0, %s333
      %s336 = sphi 0, %s335
      %s350 = sphi 0, %s336
      %s356 = sphi 0, %s358
      %s359 = sphi 0, %s356
      %s360 = sphi 0, %s359
      %s376 = sphi 0, %s360
    $region4: #{tpu_custom_call.1} parent=1 // loop_header_branch
      %29 = sbr.rel (%p27) target = $region8
    $region5: #{tpu_custom_call.1} parent=1 // loop_body
      %s31 = ssub.s32 %s26, 1
      %s32 = ssub.s32 %s26, 2
      %s33 = sadd.s32 %s26, 1
      %s34 = ssub.s32 %s26, %s33
      %p35 = scmp.eq.s32.totalorder %s34, 0
      %s37 = sadd.s32 %s36, 1
      %s38 = scalar_select %p35, %s36, %s37
      %p41 = pneg %p35
      %p42 = scmp.eq.s32.totalorder %s26, 1
      %p43 = por %p41, %p42
      %p44 = scmp.ne.s32.totalorder %s36, %s39
      %p45 = scmp.eq.s32.totalorder %s26, 0
      %p46 = por %p44, %p45
      %p47 = scmp.ne.s32.totalorder %s36, %s39
      %p48 = scmp.eq.s32.totalorder %s31, 1
      %p49 = por %p47, %p48
      %p50 = scmp.ne.s32.totalorder %s39, %s40
      %p51 = scmp.eq.s32.totalorder %s31, 0
      %p52 = por %p50, %p51
      %p53 = scmp.ne.s32.totalorder %s39, %s40
      %p54 = scmp.eq.s32.totalorder %s32, 1
      %p55 = por %p53, %p54
      %p57 = scmp.ne.s32.totalorder %s40, %s56
      %p58 = scmp.eq.s32.totalorder %s32, 0
      %p59 = por %p57, %p58
      %s61 = sadd.s32 %s60, 1
      %p64 = scmp.eq.s32.totalorder %s26, 1
      %p65 = scmp.ne.s32.totalorder %s60, %s62
      %p66 = scmp.eq.s32.totalorder %s26, 0
      %p67 = por %p65, %p66
      %p68 = scmp.ne.s32.totalorder %s60, %s62
      %p69 = scmp.eq.s32.totalorder %s31, 1
      %p70 = por %p68, %p69
      %p71 = scmp.ne.s32.totalorder %s62, %s63
      %p72 = scmp.eq.s32.totalorder %s31, 0
      %p73 = por %p71, %p72
      %p74 = scmp.ne.s32.totalorder %s62, %s63
      %p75 = scmp.eq.s32.totalorder %s32, 1
      %p76 = por %p74, %p75
      %p78 = scmp.ne.s32.totalorder %s63, %s77
      %p79 = scmp.eq.s32.totalorder %s32, 0
      %p80 = por %p78, %p79
      %s82 = sadd.s32 %s81, 1
      %p85 = scmp.eq.s32.totalorder %s26, 1
      %p86 = scmp.ne.s32.totalorder %s81, %s83
      %p87 = scmp.eq.s32.totalorder %s26, 0
      %p88 = por %p86, %p87
      %p89 = scmp.ne.s32.totalorder %s81, %s83
      %p90 = scmp.eq.s32.totalorder %s31, 1
      %p91 = por %p89, %p90
      %p92 = scmp.ne.s32.totalorder %s83, %s84
      %p93 = scmp.eq.s32.totalorder %s31, 0
      %p94 = por %p92, %p93
      %p95 = scmp.ne.s32.totalorder %s83, %s84
      %p96 = scmp.eq.s32.totalorder %s32, 1
      %p97 = por %p95, %p96
      %p99 = scmp.ne.s32.totalorder %s84, %s98
      %p100 = scmp.eq.s32.totalorder %s32, 0
      %p101 = por %p99, %p100
      %s103 = sadd.s32 %s102, 1
      %p106 = scmp.eq.s32.totalorder %s26, 1
      %p107 = scmp.ne.s32.totalorder %s102, %s104
      %p108 = scmp.eq.s32.totalorder %s26, 0
      %p109 = por %p107, %p108
      %p110 = scmp.ne.s32.totalorder %s102, %s104
      %p111 = scmp.eq.s32.totalorder %s31, 1
      %p112 = por %p110, %p111
      %p113 = scmp.ne.s32.totalorder %s104, %s105
      %p114 = scmp.eq.s32.totalorder %s31, 0
      %p115 = por %p113, %p114
      %p116 = scmp.ne.s32.totalorder %s104, %s105
      %p117 = scmp.eq.s32.totalorder %s32, 1
      %p118 = por %p116, %p117
      %p120 = scmp.ne.s32.totalorder %s105, %s119
      %p121 = scmp.eq.s32.totalorder %s32, 0
      %p122 = por %p120, %p121
      %s124 = sadd.s32 %s123, 1
      %p127 = scmp.eq.s32.totalorder %s26, 1
      %p128 = scmp.ne.s32.totalorder %s123, %s125
      %p129 = scmp.eq.s32.totalorder %s26, 0
      %p130 = por %p128, %p129
      %p131 = scmp.ne.s32.totalorder %s123, %s125
      %p132 = scmp.eq.s32.totalorder %s31, 1
      %p133 = por %p131, %p132
      %p134 = scmp.ne.s32.totalorder %s125, %s126
      %p135 = scmp.eq.s32.totalorder %s31, 0
      %p136 = por %p134, %p135
      %p137 = scmp.ne.s32.totalorder %s125, %s126
      %p138 = scmp.eq.s32.totalorder %s32, 1
      %p139 = por %p137, %p138
      %p141 = scmp.ne.s32.totalorder %s126, %s140
      %p142 = scmp.eq.s32.totalorder %s32, 0
      %p143 = por %p141, %p142
      %s145 = sadd.s32 %s144, 1
      %p148 = scmp.eq.s32.totalorder %s26, 1
      %p149 = scmp.ne.s32.totalorder %s144, %s146
      %p150 = scmp.eq.s32.totalorder %s26, 0
      %p151 = por %p149, %p150
      %p152 = scmp.ne.s32.totalorder %s144, %s146
      %p153 = scmp.eq.s32.totalorder %s31, 1
      %p154 = por %p152, %p153
      %p155 = scmp.ne.s32.totalorder %s146, %s147
      %p156 = scmp.eq.s32.totalorder %s31, 0
      %p157 = por %p155, %p156
      %p158 = scmp.ne.s32.totalorder %s146, %s147
      %p159 = scmp.eq.s32.totalorder %s32, 1
      %p160 = por %p158, %p159
      %p162 = scmp.ne.s32.totalorder %s147, %s161
      %p163 = scmp.eq.s32.totalorder %s32, 0
      %p164 = por %p162, %p163
      %s166 = sadd.s32 %s165, 1
      %p169 = scmp.eq.s32.totalorder %s26, 1
      %p170 = scmp.ne.s32.totalorder %s165, %s167
      %p171 = scmp.eq.s32.totalorder %s26, 0
      %p172 = por %p170, %p171
      %p173 = scmp.ne.s32.totalorder %s165, %s167
      %p174 = scmp.eq.s32.totalorder %s31, 1
      %p175 = por %p173, %p174
      %p176 = scmp.ne.s32.totalorder %s167, %s168
      %p177 = scmp.eq.s32.totalorder %s31, 0
      %p178 = por %p176, %p177
      %p179 = scmp.ne.s32.totalorder %s167, %s168
      %p180 = scmp.eq.s32.totalorder %s32, 1
      %p181 = por %p179, %p180
      %p183 = scmp.ne.s32.totalorder %s168, %s182
      %p184 = scmp.eq.s32.totalorder %s32, 0
      %p185 = por %p183, %p184
      %s187 = sadd.s32 %s186, 1
      %p190 = scmp.eq.s32.totalorder %s26, 1
      %p191 = scmp.ne.s32.totalorder %s186, %s188
      %p192 = scmp.eq.s32.totalorder %s26, 0
      %p193 = por %p191, %p192
      %p194 = scmp.ne.s32.totalorder %s186, %s188
      %p195 = scmp.eq.s32.totalorder %s31, 1
      %p196 = por %p194, %p195
      %p197 = scmp.ne.s32.totalorder %s188, %s189
      %p198 = scmp.eq.s32.totalorder %s31, 0
      %p199 = por %p197, %p198
      %p200 = scmp.ne.s32.totalorder %s188, %s189
      %p201 = scmp.eq.s32.totalorder %s32, 1
      %p202 = por %p200, %p201
      %p204 = scmp.ne.s32.totalorder %s189, %s203
      %p205 = scmp.eq.s32.totalorder %s32, 0
      %p206 = por %p204, %p205
      %s208 = sadd.s32 %s207, 1
      %p211 = scmp.eq.s32.totalorder %s26, 1
      %p212 = scmp.ne.s32.totalorder %s207, %s209
      %p213 = scmp.eq.s32.totalorder %s26, 0
      %p214 = por %p212, %p213
      %p215 = scmp.ne.s32.totalorder %s207, %s209
      %p216 = scmp.eq.s32.totalorder %s31, 1
      %p217 = por %p215, %p216
      %p218 = scmp.ne.s32.totalorder %s209, %s210
      %p219 = scmp.eq.s32.totalorder %s31, 0
      %p220 = por %p218, %p219
      %p221 = scmp.ne.s32.totalorder %s209, %s210
      %p222 = scmp.eq.s32.totalorder %s32, 1
      %p223 = por %p221, %p222
      %p225 = scmp.ne.s32.totalorder %s210, %s224
      %p226 = scmp.eq.s32.totalorder %s32, 0
      %p227 = por %p225, %p226
      %s229 = sadd.s32 %s228, 1
      %p232 = scmp.eq.s32.totalorder %s26, 1
      %p233 = scmp.ne.s32.totalorder %s228, %s230
      %p234 = scmp.eq.s32.totalorder %s26, 0
      %p235 = por %p233, %p234
      %p236 = scmp.ne.s32.totalorder %s228, %s230
      %p237 = scmp.eq.s32.totalorder %s31, 1
      %p238 = por %p236, %p237
      %p239 = scmp.ne.s32.totalorder %s230, %s231
      %p240 = scmp.eq.s32.totalorder %s31, 0
      %p241 = por %p239, %p240
      %p242 = scmp.ne.s32.totalorder %s230, %s231
      %p243 = scmp.eq.s32.totalorder %s32, 1
      %p244 = por %p242, %p243
      %p246 = scmp.ne.s32.totalorder %s231, %s245
      %p247 = scmp.eq.s32.totalorder %s32, 0
      %p248 = por %p246, %p247
      %s250 = sadd.s32 %s249, 1
      %p253 = scmp.eq.s32.totalorder %s26, 1
      %p254 = scmp.ne.s32.totalorder %s249, %s251
      %p255 = scmp.eq.s32.totalorder %s26, 0
      %p256 = por %p254, %p255
      %p257 = scmp.ne.s32.totalorder %s249, %s251
      %p258 = scmp.eq.s32.totalorder %s31, 1
      %p259 = por %p257, %p258
      %p260 = scmp.ne.s32.totalorder %s251, %s252
      %p261 = scmp.eq.s32.totalorder %s31, 0
      %p262 = por %p260, %p261
      %p263 = scmp.ne.s32.totalorder %s251, %s252
      %p264 = scmp.eq.s32.totalorder %s32, 1
      %p265 = por %p263, %p264
      %p267 = scmp.ne.s32.totalorder %s252, %s266
      %p268 = scmp.eq.s32.totalorder %s32, 0
      %p269 = por %p267, %p268
      %s271 = sadd.s32 %s270, 1
      %p274 = scmp.eq.s32.totalorder %s26, 1
      %p275 = scmp.ne.s32.totalorder %s270, %s272
      %p276 = scmp.eq.s32.totalorder %s26, 0
      %p277 = por %p275, %p276
      %p278 = scmp.ne.s32.totalorder %s270, %s272
      %p279 = scmp.eq.s32.totalorder %s31, 1
      %p280 = por %p278, %p279
      %p281 = scmp.ne.s32.totalorder %s272, %s273
      %p282 = scmp.eq.s32.totalorder %s31, 0
      %p283 = por %p281, %p282
      %p284 = scmp.ne.s32.totalorder %s272, %s273
      %p285 = scmp.eq.s32.totalorder %s32, 1
      %p286 = por %p284, %p285
      %p288 = scmp.ne.s32.totalorder %s273, %s287
      %p289 = scmp.eq.s32.totalorder %s32, 0
      %p290 = por %p288, %p289
      %s292 = sadd.s32 %s291, 1
      %p295 = scmp.eq.s32.totalorder %s26, 1
      %p296 = scmp.ne.s32.totalorder %s291, %s293
      %p297 = scmp.eq.s32.totalorder %s26, 0
      %p298 = por %p296, %p297
      %p299 = scmp.ne.s32.totalorder %s291, %s293
      %p300 = scmp.eq.s32.totalorder %s31, 1
      %p301 = por %p299, %p300
      %p302 = scmp.ne.s32.totalorder %s293, %s294
      %p303 = scmp.eq.s32.totalorder %s31, 0
      %p304 = por %p302, %p303
      %p305 = scmp.ne.s32.totalorder %s293, %s294
      %p306 = scmp.eq.s32.totalorder %s32, 1
      %p307 = por %p305, %p306
      %p309 = scmp.ne.s32.totalorder %s294, %s308
      %p310 = scmp.eq.s32.totalorder %s32, 0
      %p311 = por %p309, %p310
      %s313 = sadd.s32 %s312, 1
      %p316 = scmp.eq.s32.totalorder %s26, 1
      %p317 = scmp.ne.s32.totalorder %s312, %s314
      %p318 = scmp.eq.s32.totalorder %s26, 0
      %p319 = por %p317, %p318
      %p320 = scmp.ne.s32.totalorder %s312, %s314
      %p321 = scmp.eq.s32.totalorder %s31, 1
      %p322 = por %p320, %p321
      %p323 = scmp.ne.s32.totalorder %s314, %s315
      %p324 = scmp.eq.s32.totalorder %s31, 0
      %p325 = por %p323, %p324
      %p326 = scmp.ne.s32.totalorder %s314, %s315
      %p327 = scmp.eq.s32.totalorder %s32, 1
      %p328 = por %p326, %p327
      %p330 = scmp.ne.s32.totalorder %s315, %s329
      %p331 = scmp.eq.s32.totalorder %s32, 0
      %p332 = por %p330, %p331
      %s334 = sadd.s32 %s333, 1
      %p337 = scmp.eq.s32.totalorder %s26, 1
      %p338 = scmp.ne.s32.totalorder %s333, %s335
      %p339 = scmp.eq.s32.totalorder %s26, 0
      %p340 = por %p338, %p339
      %p341 = scmp.ne.s32.totalorder %s333, %s335
      %p342 = scmp.eq.s32.totalorder %s31, 1
      %p343 = por %p341, %p342
      %p344 = scmp.ne.s32.totalorder %s335, %s336
      %p345 = scmp.eq.s32.totalorder %s31, 0
      %p346 = por %p344, %p345
      %p347 = scmp.ne.s32.totalorder %s335, %s336
      %p348 = scmp.eq.s32.totalorder %s32, 1
      %p349 = por %p347, %p348
      %p351 = scmp.ne.s32.totalorder %s336, %s350
      %p352 = scmp.eq.s32.totalorder %s32, 0
      %p353 = por %p351, %p352
      %s354 = ssub.s32 %s26, %s33
      %p355 = scmp.eq.s32.totalorder %s354, 0
      %s357 = sadd.s32 %s356, 1
      %s358 = scalar_select %p355, %s356, %s357
      %p361 = pneg %p355
      %p362 = scmp.eq.s32.totalorder %s26, 1
      %p363 = por %p361, %p362
      %p364 = scmp.ne.s32.totalorder %s356, %s359
      %p365 = scmp.eq.s32.totalorder %s26, 0
      %p366 = por %p364, %p365
      %p367 = scmp.ne.s32.totalorder %s356, %s359
      %p368 = scmp.eq.s32.totalorder %s31, 1
      %p369 = por %p367, %p368
      %p370 = scmp.ne.s32.totalorder %s359, %s360
      %p371 = scmp.eq.s32.totalorder %s31, 0
      %p372 = por %p370, %p371
      %p373 = scmp.ne.s32.totalorder %s359, %s360
      %p374 = scmp.eq.s32.totalorder %s32, 1
      %p375 = por %p373, %p374
      %p377 = scmp.ne.s32.totalorder %s360, %s376
      %p378 = scmp.eq.s32.totalorder %s32, 0
      %p379 = por %p377, %p378
      %p380 = scmp.le.s32.totalorder 1, %s26
      %p381 = scmp.lt.s32.totalorder %s26, 3
      %p382 = pnand %p380, %p381
      %p383 = pneg %p382
      // Predicated region
      $region9: #{tpu_custom_call.1} parent=5 // pred_check
        _
      $region10: #{tpu_custom_call.1} parent=5 // pred_check_branch
        %385 = sbr.rel (%p382) target = $region12
      $region11: #{tpu_custom_call.1} parent=5 // pred_region
        %s386 = ssub.s32 %s26, 1
        // Predicated region
        $region13: #{tpu_custom_call.1} parent=11 // pred_check
          %p387 = pneg %p73
        $region14: #{tpu_custom_call.1} parent=11 // pred_check_branch
          %389 = sbr.rel (%p387) target = $region16
        $region15: #{tpu_custom_call.1} parent=11 // pred_region
          %391 = vsyncadd [#allocation3], 0
          %s392 = sshll.u32 %s1, 4
          %s393 = int_to_ptr.hbm [resolvable:$true] %s392
          %s394 = sshll.u32 [#allocation2], 4
          %s395 = int_to_ptr.vmem [resolvable:$true] %s394
          %400 = dma.hbm_to_vmem [thread:$0]  %s393, 7424, %s395, [#allocation3], 128, 128, 8
        $region16: #{tpu_custom_call.1} parent=11 // pred_fallthru
          _
        // Predicated region
        $region17: #{tpu_custom_call.1} parent=11 // pred_check
          %p401 = pneg %p94
        $region18: #{tpu_custom_call.1} parent=11 // pred_check_branch
          %403 = sbr.rel (%p401) target = $region20
        $region19: #{tpu_custom_call.1} parent=11 // pred_region
          _
        $region20: #{tpu_custom_call.1} parent=11 // pred_fallthru
          _
        // Predicated region
        $region21: #{tpu_custom_call.1} parent=11 // pred_check
          %p404 = pneg %p115
        $region22: #{tpu_custom_call.1} parent=11 // pred_check_branch
          %406 = sbr.rel (%p404) target = $region24
        $region23: #{tpu_custom_call.1} parent=11 // pred_region
          _
        $region24: #{tpu_custom_call.1} parent=11 // pred_fallthru
          _
        // Predicated region
        $region25: #{tpu_custom_call.1} parent=11 // pred_check
          %p407 = pneg %p136
        $region26: #{tpu_custom_call.1} parent=11 // pred_check_branch
          %409 = sbr.rel (%p407) target = $region28
        $region27: #{tpu_custom_call.1} parent=11 // pred_region
          _
        $region28: #{tpu_custom_call.1} parent=11 // pred_fallthru
          _
        // Predicated region
        $region29: #{tpu_custom_call.1} parent=11 // pred_check
          %p410 = pneg %p157
        $region30: #{tpu_custom_call.1} parent=11 // pred_check_branch
          %412 = sbr.rel (%p410) target = $region32
        $region31: #{tpu_custom_call.1} parent=11 // pred_region
          %414 = vsyncadd [#allocation6], 0
          %s415 = sshll.u32 %s5, 4
          %s416 = int_to_ptr.hbm [resolvable:$true] %s415
          %s417 = sshll.u32 [#allocation5], 4
          %s418 = int_to_ptr.vmem [resolvable:$true] %s417
          %423 = dma.hbm_to_vmem [thread:$0]  %s416, 1024, %s418, [#allocation6], 64, 64, 4
        $region32: #{tpu_custom_call.1} parent=11 // pred_fallthru
          _
        // Predicated region
        $region33: #{tpu_custom_call.1} parent=11 // pred_check
          %p424 = pneg %p178
        $region34: #{tpu_custom_call.1} parent=11 // pred_check_branch
          %426 = sbr.rel (%p424) target = $region36
        $region35: #{tpu_custom_call.1} parent=11 // pred_region
          _
        $region36: #{tpu_custom_call.1} parent=11 // pred_fallthru
          _
        // Predicated region
        $region37: #{tpu_custom_call.1} parent=11 // pred_check
          %p427 = pneg %p199
        $region38: #{tpu_custom_call.1} parent=11 // pred_check_branch
          %429 = sbr.rel (%p427) target = $region40
        $region39: #{tpu_custom_call.1} parent=11 // pred_region
          _
        $region40: #{tpu_custom_call.1} parent=11 // pred_fallthru
          _
        // Predicated region
        $region41: #{tpu_custom_call.1} parent=11 // pred_check
          %p430 = pneg %p220
        $region42: #{tpu_custom_call.1} parent=11 // pred_check_branch
          %432 = sbr.rel (%p430) target = $region44
        $region43: #{tpu_custom_call.1} parent=11 // pred_region
          _
        $region44: #{tpu_custom_call.1} parent=11 // pred_fallthru
          _
        // Predicated region
        $region45: #{tpu_custom_call.1} parent=11 // pred_check
          %p433 = pneg %p241
        $region46: #{tpu_custom_call.1} parent=11 // pred_check_branch
          %435 = sbr.rel (%p433) target = $region48
        $region47: #{tpu_custom_call.1} parent=11 // pred_region
          _
        $region48: #{tpu_custom_call.1} parent=11 // pred_fallthru
          _
        // Predicated region
        $region49: #{tpu_custom_call.1} parent=11 // pred_check
          %p436 = pneg %p262
        $region50: #{tpu_custom_call.1} parent=11 // pred_check_branch
          %438 = sbr.rel (%p436) target = $region52
        $region51: #{tpu_custom_call.1} parent=11 // pred_region
          _
        $region52: #{tpu_custom_call.1} parent=11 // pred_fallthru
          _
        // Predicated region
        $region53: #{tpu_custom_call.1} parent=11 // pred_check
          %p439 = pneg %p283
        $region54: #{tpu_custom_call.1} parent=11 // pred_check_branch
          %441 = sbr.rel (%p439) target = $region56
        $region55: #{tpu_custom_call.1} parent=11 // pred_region
          _
        $region56: #{tpu_custom_call.1} parent=11 // pred_fallthru
          _
        // Predicated region
        $region57: #{tpu_custom_call.1} parent=11 // pred_check
          %p442 = pneg %p304
        $region58: #{tpu_custom_call.1} parent=11 // pred_check_branch
          %444 = sbr.rel (%p442) target = $region60
        $region59: #{tpu_custom_call.1} parent=11 // pred_region
          _
        $region60: #{tpu_custom_call.1} parent=11 // pred_fallthru
          _
        // Predicated region
        $region61: #{tpu_custom_call.1} parent=11 // pred_check
          %p445 = pneg %p325
        $region62: #{tpu_custom_call.1} parent=11 // pred_check_branch
          %447 = sbr.rel (%p445) target = $region64
        $region63: #{tpu_custom_call.1} parent=11 // pred_region
          _
        $region64: #{tpu_custom_call.1} parent=11 // pred_fallthru
          _
        // Predicated region
        $region65: #{tpu_custom_call.1} parent=11 // pred_check
          %p448 = pneg %p346
        $region66: #{tpu_custom_call.1} parent=11 // pred_check_branch
          %450 = sbr.rel (%p448) target = $region68
        $region67: #{tpu_custom_call.1} parent=11 // pred_region
          _
        $region68: #{tpu_custom_call.1} parent=11 // pred_fallthru
          _
      $region12: #{tpu_custom_call.1} parent=5 // pred_fallthru
        _
      %p451 = scmp.lt.s32.totalorder %s26, 2
      // Predicated region
      $region69: #{tpu_custom_call.1} parent=5 // pred_check
        %p452 = pneg %p451
      $region70: #{tpu_custom_call.1} parent=5 // pred_check_branch
        %454 = sbr.rel (%p452) target = $region72
      $region71: #{tpu_custom_call.1} parent=5 // pred_region
        // Predicated region
        $region73: #{tpu_custom_call.1} parent=71 // pred_check
          %p455 = pneg %p46
        $region74: #{tpu_custom_call.1} parent=71 // pred_check_branch
          %457 = sbr.rel (%p455) target = $region76
        $region75: #{tpu_custom_call.1} parent=71 // pred_region
          %p458 = scmp.lt.s32.totalorder %s26, 1
          %s459 = scalar_select %p458, %s26, 1
          %s460 = smul.addr %s459, 4
          %s461 = smul.addr %s460, 8
          %s462 = scalar_lea.vmem %s0, %s461
        $region76: #{tpu_custom_call.1} parent=71 // pred_fallthru
          _
      $region72: #{tpu_custom_call.1} parent=5 // pred_fallthru
        _
      %p463 = scmp.le.s32.totalorder 1, %s26
      %p464 = scmp.lt.s32.totalorder %s26, 3
      %p465 = pnand %p463, %p464
      %p466 = pneg %p465
      // Predicated region
      $region77: #{tpu_custom_call.1} parent=5 // pred_check
        _
      $region78: #{tpu_custom_call.1} parent=5 // pred_check_branch
        %468 = sbr.rel (%p465) target = $region80
      $region79: #{tpu_custom_call.1} parent=5 // pred_region
        %s469 = ssub.s32 %s26, 1
        // Predicated region
        $region81: #{tpu_custom_call.1} parent=79 // pred_check
          %p470 = pneg %p73
        $region82: #{tpu_custom_call.1} parent=79 // pred_check_branch
          %472 = sbr.rel (%p470) target = $region84
        $region83: #{tpu_custom_call.1} parent=79 // pred_region
          %474 = dma.done [#allocation3], 7424
        $region84: #{tpu_custom_call.1} parent=79 // pred_fallthru
          _
        // Predicated region
        $region85: #{tpu_custom_call.1} parent=79 // pred_check
          %p475 = pneg %p157
        $region86: #{tpu_custom_call.1} parent=79 // pred_check_branch
          %477 = sbr.rel (%p475) target = $region88
        $region87: #{tpu_custom_call.1} parent=79 // pred_region
          %479 = dma.done [#allocation6], 1024
        $region88: #{tpu_custom_call.1} parent=79 // pred_fallthru
          _
        %p480 = scmp.lt.s32.totalorder %s31, 1
        %s481 = scalar_select %p480, %s31, 1
        %s482 = smul.addr %s481, 4
        %s483 = smul.addr %s482, 8
        %s484 = scalar_lea.vmem %s0, %s483
        %p485 = pneg %p52
        %p486 = pneg %p49
        %p487 = pneg %p73
        %p488 = pneg %p70
        %p489 = pneg %p94
        %p490 = pneg %p91
        %p491 = pneg %p115
        %p492 = pneg %p112
        %p493 = pneg %p136
        %p494 = pneg %p133
        %p495 = pneg %p157
        %p496 = pneg %p154
        %p497 = pneg %p178
        %p498 = pneg %p175
        %p499 = pneg %p199
        %p500 = pneg %p196
        %p501 = pneg %p220
        %p502 = pneg %p217
        %p503 = pneg %p241
        %p504 = pneg %p238
        %p505 = pneg %p262
        %p506 = pneg %p259
        %p507 = pneg %p283
        %p508 = pneg %p280
        %p509 = pneg %p304
        %p510 = pneg %p301
        %p511 = pneg %p325
        %p512 = pneg %p322
        %p513 = pneg %p346
        %p514 = pneg %p343
        %p515 = pneg %p372
        %p516 = pneg %p369
        %s517 = sand.u32 %s359, 1
        %s518 = scalar_lea.sflag [#allocation4], %s517
        %s519 = sand.u32 %s359, 1
        %s520 = smul.addr %s519, 8
        %s521 = scalar_lea.vmem [#allocation7], %s520
        %p522 = scmp.lt.s32.totalorder %s31, 1
        %s523 = scalar_select %p522, %s31, 1
        %s524 = smul.addr %s523, 4
        %s525 = smul.addr %s524, 8
        %s526 = scalar_lea.vmem %s0, %s525
        %v528 = vld [vmem:[%s526] sm:$0xff]
        %v529 = vld [vmem:[%s526 + $0x8] sm:$0xff]
        %v530 = vld [vmem:[%s526 + $0x10] sm:$0xff]
        %v531 = vld [vmem:[%s526 + $0x18] sm:$0xff]
        %v532 = vpack.c.bf16 %v528, %v528
        %v533 = vpack.c.bf16 %v529, %v529
        %v534 = vpack.c.bf16 %v530, %v530
        %v535 = vpack.c.bf16 %v531, %v531
        %v536 = vld [vmem:[#allocation2] sm:$0xff]
        %v537 = vld [vmem:[#allocation2 + $0x8] sm:$0xff]
        %v538 = vld [vmem:[#allocation2 + $0x10] sm:$0xff]
        %v539 = vld [vmem:[#allocation2 + $0x18] sm:$0xff]
        %v540 = vld [vmem:[#allocation2 + $0x20] sm:$0xff]
        %v541 = vld [vmem:[#allocation2 + $0x28] sm:$0xff]
        %v542 = vld [vmem:[#allocation2 + $0x30] sm:$0xff]
        %v543 = vld [vmem:[#allocation2 + $0x38] sm:$0xff]
        %v544 = vld [vmem:[#allocation2 + $0x40] sm:$0xff]
        %v545 = vld [vmem:[#allocation2 + $0x48] sm:$0xff]
        %v546 = vld [vmem:[#allocation2 + $0x50] sm:$0xff]
        %v547 = vld [vmem:[#allocation2 + $0x58] sm:$0xff]
        %v548 = vld [vmem:[#allocation2 + $0x60] sm:$0xff]
        %v549 = vld [vmem:[#allocation2 + $0x68] sm:$0xff]
        %v550 = vld [vmem:[#allocation2 + $0x70] sm:$0xff]
        %v551 = vld [vmem:[#allocation2 + $0x78] sm:$0xff]
        %v552 = vld [vmem:[#allocation2 + $0x80] sm:$0xff]
        %v553 = vld [vmem:[#allocation2 + $0x88] sm:$0xff]
        %v554 = vld [vmem:[#allocation2 + $0x90] sm:$0xff]
        %v555 = vld [vmem:[#allocation2 + $0x98] sm:$0xff]
        %v556 = vld [vmem:[#allocation2 + $0xa0] sm:$0xff]
        %v557 = vld [vmem:[#allocation2 + $0xa8] sm:$0xff]
        %v558 = vld [vmem:[#allocation2 + $0xb0] sm:$0xff]
        %v559 = vld [vmem:[#allocation2 + $0xb8] sm:$0xff]
        %v560 = vld [vmem:[#allocation2 + $0xc0] sm:$0xff]
        %v561 = vld [vmem:[#allocation2 + $0xc8] sm:$0xff]
        %v562 = vld [vmem:[#allocation2 + $0xd0] sm:$0xff]
        %v563 = vld [vmem:[#allocation2 + $0xd8] sm:$0xff]
        %v564 = vld [vmem:[#allocation2 + $0xe0] sm:$0xff]
        %v565 = vld [vmem:[#allocation2 + $0xe8] sm:$0xff]
        %v566 = vld [vmem:[#allocation2 + $0xf0] sm:$0xff]
        %v567 = vld [vmem:[#allocation2 + $0xf8] sm:$0xff]
        %v568 = vld [vmem:[#allocation2 + $0x100] sm:$0xff]
        %v569 = vld [vmem:[#allocation2 + $0x108] sm:$0xff]
        %v570 = vld [vmem:[#allocation2 + $0x110] sm:$0xff]
        %v571 = vld [vmem:[#allocation2 + $0x118] sm:$0xff]
        %v572 = vld [vmem:[#allocation2 + $0x120] sm:$0xff]
        %v573 = vld [vmem:[#allocation2 + $0x128] sm:$0xff]
        %v574 = vld [vmem:[#allocation2 + $0x130] sm:$0xff]
        %v575 = vld [vmem:[#allocation2 + $0x138] sm:$0xff]
        %v576 = vld [vmem:[#allocation2 + $0x140] sm:$0xff]
        %v577 = vld [vmem:[#allocation2 + $0x148] sm:$0xff]
        %v578 = vld [vmem:[#allocation2 + $0x150] sm:$0xff]
        %v579 = vld [vmem:[#allocation2 + $0x158] sm:$0xff]
        %v580 = vld [vmem:[#allocation2 + $0x160] sm:$0xff]
        %v581 = vld [vmem:[#allocation2 + $0x168] sm:$0xff]
        %v582 = vld [vmem:[#allocation2 + $0x170] sm:$0xff]
        %v583 = vld [vmem:[#allocation2 + $0x178] sm:$0xff]
        %v584 = vld [vmem:[#allocation2 + $0x180] sm:$0xff]
        %v585 = vld [vmem:[#allocation2 + $0x188] sm:$0xff]
        %v586 = vld [vmem:[#allocation2 + $0x190] sm:$0xff]
        %v587 = vld [vmem:[#allocation2 + $0x198] sm:$0xff]
        %v588 = vld [vmem:[#allocation2 + $0x1a0] sm:$0xff]
        %v589 = vld [vmem:[#allocation2 + $0x1a8] sm:$0xff]
        %v590 = vld [vmem:[#allocation2 + $0x1b0] sm:$0xff]
        %v591 = vld [vmem:[#allocation2 + $0x1b8] sm:$0xff]
        %v592 = vld [vmem:[#allocation2 + $0x1c0] sm:$0xff]
        %v593 = vld [vmem:[#allocation2 + $0x1c8] sm:$0xff]
        %v594 = vld [vmem:[%s2] sm:$0x3]
        %v596 = vperm.slane %v594, 0
        %v597 = vperm.slane %v594, 1
        %v658 = vunpack.c.l.b16 %v536
        %v659 = vunpack.c.h.b16 %v536
        %v660 = vunpack.c.l.b16 %v537
        %v661 = vunpack.c.h.b16 %v537
        %v662 = vunpack.c.l.b16 %v538
        %v663 = vunpack.c.h.b16 %v538
        %v664 = vunpack.c.l.b16 %v539
        %v665 = vunpack.c.h.b16 %v539
        %v666 = vunpack.c.l.b16 %v540
        %v667 = vunpack.c.h.b16 %v540
        %v668 = vunpack.c.l.b16 %v541
        %v669 = vunpack.c.h.b16 %v541
        %v670 = vunpack.c.l.b16 %v542
        %v671 = vunpack.c.h.b16 %v542
        %v672 = vunpack.c.l.b16 %v543
        %v673 = vunpack.c.h.b16 %v543
        %v674 = vunpack.c.l.b16 %v544
        %v675 = vunpack.c.h.b16 %v544
        %v676 = vunpack.c.l.b16 %v545
        %v677 = vunpack.c.h.b16 %v545
        %v678 = vunpack.c.l.b16 %v546
        %v679 = vunpack.c.h.b16 %v546
        %v680 = vunpack.c.l.b16 %v547
        %v681 = vunpack.c.h.b16 %v547
        %v682 = vunpack.c.l.b16 %v548
        %v683 = vunpack.c.h.b16 %v548
        %v684 = vunpack.c.l.b16 %v549
        %v685 = vunpack.c.h.b16 %v549
        %v686 = vunpack.c.l.b16 %v550
        %v687 = vunpack.c.h.b16 %v550
        %v688 = vunpack.c.l.b16 %v551
        %v689 = vunpack.c.h.b16 %v551
        %v690 = vunpack.c.l.b16 %v552
        %v691 = vunpack.c.h.b16 %v552
        %v692 = vunpack.c.l.b16 %v553
        %v693 = vunpack.c.h.b16 %v553
        %v694 = vunpack.c.l.b16 %v554
        %v695 = vunpack.c.h.b16 %v554
        %v696 = vunpack.c.l.b16 %v555
        %v697 = vunpack.c.h.b16 %v555
        %v698 = vunpack.c.l.b16 %v556
        %v699 = vunpack.c.h.b16 %v556
        %v700 = vunpack.c.l.b16 %v557
        %v701 = vunpack.c.h.b16 %v557
        %v702 = vunpack.c.l.b16 %v558
        %v703 = vunpack.c.h.b16 %v558
        %v704 = vunpack.c.l.b16 %v559
        %v705 = vunpack.c.h.b16 %v559
        %v706 = vunpack.c.l.b16 %v560
        %v707 = vunpack.c.h.b16 %v560
        %v708 = vunpack.c.l.b16 %v561
        %v709 = vunpack.c.h.b16 %v561
        %v710 = vunpack.c.l.b16 %v562
        %v711 = vunpack.c.h.b16 %v562
        %v712 = vunpack.c.l.b16 %v563
        %v713 = vunpack.c.h.b16 %v563
        %v714 = vunpack.c.l.b16 %v564
        %v715 = vunpack.c.h.b16 %v564
        %v716 = vunpack.c.l.b16 %v565
        %v717 = vunpack.c.h.b16 %v565
        %v718 = vunpack.c.l.b16 %v566
        %v719 = vunpack.c.h.b16 %v566
        %v720 = vunpack.c.l.b16 %v567
        %v721 = vunpack.c.h.b16 %v567
        %v722 = vunpack.c.l.b16 %v568
        %v723 = vunpack.c.h.b16 %v568
        %v724 = vunpack.c.l.b16 %v569
        %v725 = vunpack.c.h.b16 %v569
        %v726 = vunpack.c.l.b16 %v570
        %v727 = vunpack.c.h.b16 %v570
        %v728 = vunpack.c.l.b16 %v571
        %v729 = vunpack.c.h.b16 %v571
        %v730 = vunpack.c.l.b16 %v572
        %v731 = vunpack.c.h.b16 %v572
        %v732 = vunpack.c.l.b16 %v573
        %v733 = vunpack.c.h.b16 %v573
        %v734 = vunpack.c.l.b16 %v574
        %v735 = vunpack.c.h.b16 %v574
        %v736 = vunpack.c.l.b16 %v575
        %v737 = vunpack.c.h.b16 %v575
        %v738 = vunpack.c.l.b16 %v576
        %v739 = vunpack.c.h.b16 %v576
        %v740 = vunpack.c.l.b16 %v577
        %v741 = vunpack.c.h.b16 %v577
        %v742 = vunpack.c.l.b16 %v578
        %v743 = vunpack.c.h.b16 %v578
        %v744 = vunpack.c.l.b16 %v579
        %v745 = vunpack.c.h.b16 %v579
        %v746 = vunpack.c.l.b16 %v580
        %v747 = vunpack.c.h.b16 %v580
        %v748 = vunpack.c.l.b16 %v581
        %v749 = vunpack.c.h.b16 %v581
        %v750 = vunpack.c.l.b16 %v582
        %v751 = vunpack.c.h.b16 %v582
        %v752 = vunpack.c.l.b16 %v583
        %v753 = vunpack.c.h.b16 %v583
        %v754 = vunpack.c.l.b16 %v584
        %v755 = vunpack.c.h.b16 %v584
        %v756 = vunpack.c.l.b16 %v585
        %v757 = vunpack.c.h.b16 %v585
        %v758 = vunpack.c.l.b16 %v586
        %v759 = vunpack.c.h.b16 %v586
        %v760 = vunpack.c.l.b16 %v587
        %v761 = vunpack.c.h.b16 %v587
        %v762 = vunpack.c.l.b16 %v588
        %v763 = vunpack.c.h.b16 %v588
        %v764 = vunpack.c.l.b16 %v589
        %v765 = vunpack.c.h.b16 %v589
        %v766 = vunpack.c.l.b16 %v590
        %v767 = vunpack.c.h.b16 %v590
        %v768 = vunpack.c.l.b16 %v591
        %v769 = vunpack.c.h.b16 %v591
        %v770 = vunpack.c.l.b16 %v592
        %v771 = vunpack.c.h.b16 %v592
        %v772 = vunpack.c.l.b16 %v593
        %v773 = vunpack.c.h.b16 %v593
        %v774 = vpack.c.b16 %v660, %v658
        %v775 = vpack.c.b16 %v661, %v659
        %v776 = vpack.c.b16 %v664, %v662
        %v777 = vpack.c.b16 %v665, %v663
        %v778 = vpack.c.b16 %v668, %v666
        %v779 = vpack.c.b16 %v669, %v667
        %v780 = vpack.c.b16 %v672, %v670
        %v781 = vpack.c.b16 %v673, %v671
        %v782 = vpack.c.b16 %v676, %v674
        %v783 = vpack.c.b16 %v677, %v675
        %v784 = vpack.c.b16 %v680, %v678
        %v785 = vpack.c.b16 %v681, %v679
        %v786 = vpack.c.b16 %v684, %v682
        %v787 = vpack.c.b16 %v685, %v683
        %v788 = vpack.c.b16 %v688, %v686
        %v789 = vpack.c.b16 %v689, %v687
        %v790 = vpack.c.b16 %v692, %v690
        %v791 = vpack.c.b16 %v693, %v691
        %v792 = vpack.c.b16 %v696, %v694
        %v793 = vpack.c.b16 %v697, %v695
        %v794 = vpack.c.b16 %v700, %v698
        %v795 = vpack.c.b16 %v701, %v699
        %v796 = vpack.c.b16 %v704, %v702
        %v797 = vpack.c.b16 %v705, %v703
        %v798 = vpack.c.b16 %v708, %v706
        %v799 = vpack.c.b16 %v709, %v707
        %v800 = vpack.c.b16 %v712, %v710
        %v801 = vpack.c.b16 %v713, %v711
        %v802 = vpack.c.b16 %v716, %v714
        %v803 = vpack.c.b16 %v717, %v715
        %v804 = vpack.c.b16 %v720, %v718
        %v805 = vpack.c.b16 %v721, %v719
        %v806 = vpack.c.b16 %v724, %v722
        %v807 = vpack.c.b16 %v725, %v723
        %v808 = vpack.c.b16 %v728, %v726
        %v809 = vpack.c.b16 %v729, %v727
        %v810 = vpack.c.b16 %v732, %v730
        %v811 = vpack.c.b16 %v733, %v731
        %v812 = vpack.c.b16 %v736, %v734
        %v813 = vpack.c.b16 %v737, %v735
        %v814 = vpack.c.b16 %v740, %v738
        %v815 = vpack.c.b16 %v741, %v739
        %v816 = vpack.c.b16 %v744, %v742
        %v817 = vpack.c.b16 %v745, %v743
        %v818 = vpack.c.b16 %v748, %v746
        %v819 = vpack.c.b16 %v749, %v747
        %v820 = vpack.c.b16 %v752, %v750
        %v821 = vpack.c.b16 %v753, %v751
        %v822 = vpack.c.b16 %v756, %v754
        %v823 = vpack.c.b16 %v757, %v755
        %v824 = vpack.c.b16 %v760, %v758
        %v825 = vpack.c.b16 %v761, %v759
        %v826 = vpack.c.b16 %v764, %v762
        %v827 = vpack.c.b16 %v765, %v763
        %v828 = vpack.c.b16 %v768, %v766
        %v829 = vpack.c.b16 %v769, %v767
        %v830 = vpack.c.b16 %v772, %v770
        %v831 = vpack.c.b16 %v773, %v771
        %vm890 = vcmask 654336
        %v892 = vsel %vm890, %v535, 0
        %894 = vmatpush.bf16.msra.mxu0 %v788
        %895 = vmatpush.bf16.msra.mxu0 %v786
        %896 = vmatpush.bf16.msra.mxu0 %v784
        %897 = vmatpush.bf16.msra.mxu0 %v782
        %898 = vmatpush.bf16.msra.mxu0 %v780
        %899 = vmatpush.bf16.msra.mxu0 %v778
        %900 = vmatpush.bf16.msra.mxu0 %v776
        %901 = vmatpush.bf16.msra.mxu0 %v774
        %902 = vmatmul.bf16.gmra.mxu0 %v532
        %v903 = vpop.f32.mrf.mxu0
        %v904 = vadd.f32 %v596, %v903
        %v905 = vpop.f32.mrf.mxu0
        %906 = vdwg.mxu0
        %907 = vmatpush.bf16.msra.mxu0 %v804
        %908 = vmatpush.bf16.msra.mxu0 %v802
        %909 = vmatpush.bf16.msra.mxu0 %v800
        %910 = vmatpush.bf16.msra.mxu0 %v798
        %911 = vmatpush.bf16.msra.mxu0 %v796
        %912 = vmatpush.bf16.msra.mxu0 %v794
        %913 = vmatpush.bf16.msra.mxu0 %v792
        %914 = vmatpush.bf16.msra.mxu0 %v790
        %915 = vmatmul.bf16.gmra.mxu0 %v533
        %v916 = vpop.f32.mrf.mxu0
        %v917 = vadd.f32 %v904, %v916
        %v918 = vpop.f32.mrf.mxu0
        %919 = vdwg.mxu0
        %920 = vmatpush.bf16.msra.mxu0 %v820
        %921 = vmatpush.bf16.msra.mxu0 %v818
        %922 = vmatpush.bf16.msra.mxu0 %v816
        %923 = vmatpush.bf16.msra.mxu0 %v814
        %924 = vmatpush.bf16.msra.mxu0 %v812
        %925 = vmatpush.bf16.msra.mxu0 %v810
        %926 = vmatpush.bf16.msra.mxu0 %v808
        %927 = vmatpush.bf16.msra.mxu0 %v806
        %928 = vmatmul.bf16.gmra.mxu0 %v534
        %v929 = vpop.f32.mrf.mxu0
        %v930 = vadd.f32 %v917, %v929
        %v931 = vpop.f32.mrf.mxu0
        %932 = vdwg.mxu0
        %933 = vmatpush.bf16.msra.mxu0 0
        %934 = vmatpush.bf16.msra.mxu0 0
        %935 = vmatpush.bf16.msra.mxu0 0
        %936 = vmatpush.bf16.msra.mxu0 %v830
        %937 = vmatpush.bf16.msra.mxu0 %v828
        %938 = vmatpush.bf16.msra.mxu0 %v826
        %939 = vmatpush.bf16.msra.mxu0 %v824
        %940 = vmatpush.bf16.msra.mxu0 %v822
        %941 = vmatmul.bf16.gmra.mxu0 %v892
        %v942 = vpop.f32.mrf.mxu0
        %v943 = vadd.f32 %v930, %v942
        %v944 = vpop.f32.mrf.mxu0
        %945 = vdwg.mxu0
        %946 = vmatpush.bf16.msra.mxu0 %v789
        %947 = vmatpush.bf16.msra.mxu0 %v787
        %948 = vmatpush.bf16.msra.mxu0 %v785
        %949 = vmatpush.bf16.msra.mxu0 %v783
        %950 = vmatpush.bf16.msra.mxu0 %v781
        %951 = vmatpush.bf16.msra.mxu0 %v779
        %952 = vmatpush.bf16.msra.mxu0 %v777
        %953 = vmatpush.bf16.msra.mxu0 %v775
        %954 = vmatmul.bf16.gmra.mxu0 %v532
        %v955 = vpop.f32.mrf.mxu0
        %v956 = vadd.f32 %v597, %v955
        %v957 = vpop.f32.mrf.mxu0
        %958 = vdwg.mxu0
        %959 = vmatpush.bf16.msra.mxu0 %v805
        %960 = vmatpush.bf16.msra.mxu0 %v803
        %961 = vmatpush.bf16.msra.mxu0 %v801
        %962 = vmatpush.bf16.msra.mxu0 %v799
        %963 = vmatpush.bf16.msra.mxu0 %v797
        %964 = vmatpush.bf16.msra.mxu0 %v795
        %965 = vmatpush.bf16.msra.mxu0 %v793
        %966 = vmatpush.bf16.msra.mxu0 %v791
        %967 = vmatmul.bf16.gmra.mxu0 %v533
        %v968 = vpop.f32.mrf.mxu0
        %v969 = vadd.f32 %v956, %v968
        %v970 = vpop.f32.mrf.mxu0
        %971 = vdwg.mxu0
        %972 = vmatpush.bf16.msra.mxu0 %v821
        %973 = vmatpush.bf16.msra.mxu0 %v819
        %974 = vmatpush.bf16.msra.mxu0 %v817
        %975 = vmatpush.bf16.msra.mxu0 %v815
        %976 = vmatpush.bf16.msra.mxu0 %v813
        %977 = vmatpush.bf16.msra.mxu0 %v811
        %978 = vmatpush.bf16.msra.mxu0 %v809
        %979 = vmatpush.bf16.msra.mxu0 %v807
        %980 = vmatmul.bf16.gmra.mxu0 %v534
        %v981 = vpop.f32.mrf.mxu0
        %v982 = vadd.f32 %v969, %v981
        %v983 = vpop.f32.mrf.mxu0
        %984 = vdwg.mxu0
        %985 = vmatpush.bf16.msra.mxu0 0
        %986 = vmatpush.bf16.msra.mxu0 0
        %987 = vmatpush.bf16.msra.mxu0 0
        %988 = vmatpush.bf16.msra.mxu0 %v831
        %989 = vmatpush.bf16.msra.mxu0 %v829
        %990 = vmatpush.bf16.msra.mxu0 %v827
        %991 = vmatpush.bf16.msra.mxu0 %v825
        %992 = vmatpush.bf16.msra.mxu0 %v823
        %993 = vmatmul.bf16.gmra.mxu0 %v892
        %v994 = vpop.f32.mrf.mxu0
        %v995 = vadd.f32 %v982, %v994
        %v996 = vpop.f32.mrf.mxu0
        %997 = vdwg.mxu0
        %v998 = vmul.f32 %v943, 0.02
        %v999 = vmul.f32 %v995, 0.02
        %v1000 = vmax.f32 %v943, %v998
        %v1001 = vmax.f32 %v995, %v999
        %v1002 = vpack.c.bf16 %v1000, %v1000
        %v1003 = vpack.c.bf16 %v1001, %v1001
        %v1004 = vld [vmem:[%s3] sm:$0xf]
        %v1005 = vld [vmem:[%s3 + $0x4] sm:$0xf]
        %v1006 = vld [vmem:[%s3 + $0x8] sm:$0xf]
        %v1007 = vld [vmem:[%s3 + $0xc] sm:$0xf]
        %v1008 = vld [vmem:[%s3 + $0x10] sm:$0xf]
        %v1009 = vld [vmem:[%s3 + $0x14] sm:$0xf]
        %v1010 = vld [vmem:[%s3 + $0x18] sm:$0xf]
        %v1011 = vld [vmem:[%s3 + $0x1c] sm:$0xf]
        %v1012 = vld [vmem:[%s3 + $0x20] sm:$0xf]
        %v1013 = vld [vmem:[%s3 + $0x24] sm:$0xf]
        %v1014 = vld [vmem:[%s3 + $0x28] sm:$0xf]
        %v1015 = vld [vmem:[%s3 + $0x2c] sm:$0xf]
        %v1016 = vld [vmem:[%s3 + $0x30] sm:$0xf]
        %v1017 = vld [vmem:[%s3 + $0x34] sm:$0xf]
        %v1018 = vld [vmem:[%s3 + $0x38] sm:$0xf]
        %v1019 = vld [vmem:[%s3 + $0x3c] sm:$0xf]
        %v1020 = vld [vmem:[%s3 + $0x40] sm:$0xf]
        %v1021 = vld [vmem:[%s3 + $0x44] sm:$0xf]
        %v1022 = vld [vmem:[%s3 + $0x48] sm:$0xf]
        %v1023 = vld [vmem:[%s3 + $0x4c] sm:$0xf]
        %v1024 = vld [vmem:[%s3 + $0x50] sm:$0xf]
        %v1025 = vld [vmem:[%s3 + $0x54] sm:$0xf]
        %v1026 = vld [vmem:[%s3 + $0x58] sm:$0xf]
        %v1027 = vld [vmem:[%s3 + $0x5c] sm:$0xf]
        %v1028 = vld [vmem:[%s3 + $0x60] sm:$0xf]
        %v1029 = vld [vmem:[%s3 + $0x64] sm:$0xf]
        %v1030 = vld [vmem:[%s3 + $0x68] sm:$0xf]
        %v1031 = vld [vmem:[%s3 + $0x6c] sm:$0xf]
        %v1032 = vld [vmem:[%s3 + $0x70] sm:$0xf]
        %v1033 = vld [vmem:[%s3 + $0x74] sm:$0xf]
        %v1034 = vld [vmem:[%s3 + $0x78] sm:$0xf]
        %v1035 = vld [vmem:[%s3 + $0x7c] sm:$0xf]
        %v1036 = vld [vmem:[%s4] sm:$0x1]
        %v1038 = vperm.slane %v1036, 0
        %v1072 = vunpack.c.l.b16 %v1004
        %v1073 = vunpack.c.l.b16 %v1005
        %v1074 = vunpack.c.l.b16 %v1006
        %v1075 = vunpack.c.l.b16 %v1007
        %v1076 = vunpack.c.l.b16 %v1008
        %v1077 = vunpack.c.l.b16 %v1009
        %v1078 = vunpack.c.l.b16 %v1010
        %v1079 = vunpack.c.l.b16 %v1011
        %v1080 = vunpack.c.l.b16 %v1012
        %v1081 = vunpack.c.l.b16 %v1013
        %v1082 = vunpack.c.l.b16 %v1014
        %v1083 = vunpack.c.l.b16 %v1015
        %v1084 = vunpack.c.l.b16 %v1016
        %v1085 = vunpack.c.l.b16 %v1017
        %v1086 = vunpack.c.l.b16 %v1018
        %v1087 = vunpack.c.l.b16 %v1019
        %v1088 = vunpack.c.l.b16 %v1020
        %v1089 = vunpack.c.l.b16 %v1021
        %v1090 = vunpack.c.l.b16 %v1022
        %v1091 = vunpack.c.l.b16 %v1023
        %v1092 = vunpack.c.l.b16 %v1024
        %v1093 = vunpack.c.l.b16 %v1025
        %v1094 = vunpack.c.l.b16 %v1026
        %v1095 = vunpack.c.l.b16 %v1027
        %v1096 = vunpack.c.l.b16 %v1028
        %v1097 = vunpack.c.l.b16 %v1029
        %v1098 = vunpack.c.l.b16 %v1030
        %v1099 = vunpack.c.l.b16 %v1031
        %v1100 = vunpack.c.l.b16 %v1032
        %v1101 = vunpack.c.l.b16 %v1033
        %v1102 = vunpack.c.l.b16 %v1034
        %v1103 = vunpack.c.l.b16 %v1035
        %v1104 = vpack.c.b16 %v1073, %v1072
        %v1105 = vpack.c.b16 %v1075, %v1074
        %v1106 = vpack.c.b16 %v1077, %v1076
        %v1107 = vpack.c.b16 %v1079, %v1078
        %v1108 = vpack.c.b16 %v1081, %v1080
        %v1109 = vpack.c.b16 %v1083, %v1082
        %v1110 = vpack.c.b16 %v1085, %v1084
        %v1111 = vpack.c.b16 %v1087, %v1086
        %v1112 = vpack.c.b16 %v1089, %v1088
        %v1113 = vpack.c.b16 %v1091, %v1090
        %v1114 = vpack.c.b16 %v1093, %v1092
        %v1115 = vpack.c.b16 %v1095, %v1094
        %v1116 = vpack.c.b16 %v1097, %v1096
        %v1117 = vpack.c.b16 %v1099, %v1098
        %v1118 = vpack.c.b16 %v1101, %v1100
        %v1119 = vpack.c.b16 %v1103, %v1102
        %1136 = vmatpush.bf16.msra.mxu0 %v1111
        %1137 = vmatpush.bf16.msra.mxu0 %v1110
        %1138 = vmatpush.bf16.msra.mxu0 %v1109
        %1139 = vmatpush.bf16.msra.mxu0 %v1108
        %1140 = vmatpush.bf16.msra.mxu0 %v1107
        %1141 = vmatpush.bf16.msra.mxu0 %v1106
        %1142 = vmatpush.bf16.msra.mxu0 %v1105
        %1143 = vmatpush.bf16.msra.mxu0 %v1104
        %1144 = vmatmul.bf16.gmra.mxu0 %v1002
        %v1145 = vpop.f32.mrf.mxu0
        %v1146 = vadd.f32 %v1038, %v1145
        %v1147 = vpop.f32.mrf.mxu0
        %1148 = vdwg.mxu0
        %1149 = vmatpush.bf16.msra.mxu0 %v1119
        %1150 = vmatpush.bf16.msra.mxu0 %v1118
        %1151 = vmatpush.bf16.msra.mxu0 %v1117
        %1152 = vmatpush.bf16.msra.mxu0 %v1116
        %1153 = vmatpush.bf16.msra.mxu0 %v1115
        %1154 = vmatpush.bf16.msra.mxu0 %v1114
        %1155 = vmatpush.bf16.msra.mxu0 %v1113
        %1156 = vmatpush.bf16.msra.mxu0 %v1112
        %1157 = vmatmul.bf16.gmra.mxu0 %v1003
        %v1158 = vpop.f32.mrf.mxu0
        %v1159 = vadd.f32 %v1146, %v1158
        %v1160 = vpop.f32.mrf.mxu0
        %1161 = vdwg.mxu0
        %v1162 = vmul.f32 %v1159, 0.02
        %v1163 = vmax.f32 %v1159, %v1162
        %v1164 = vpack.c.bf16 %v1163, %v1163
        %v1165 = vld [vmem:[#allocation5] sm:$0xf]
        %v1166 = vld [vmem:[#allocation5 + $0x4] sm:$0xf]
        %v1167 = vld [vmem:[#allocation5 + $0x8] sm:$0xf]
        %v1168 = vld [vmem:[#allocation5 + $0xc] sm:$0xf]
        %v1169 = vld [vmem:[#allocation5 + $0x10] sm:$0xf]
        %v1170 = vld [vmem:[#allocation5 + $0x14] sm:$0xf]
        %v1171 = vld [vmem:[#allocation5 + $0x18] sm:$0xf]
        %v1172 = vld [vmem:[#allocation5 + $0x1c] sm:$0xf]
        %v1173 = vld [vmem:[#allocation5 + $0x20] sm:$0xf]
        %v1174 = vld [vmem:[#allocation5 + $0x24] sm:$0xf]
        %v1175 = vld [vmem:[#allocation5 + $0x28] sm:$0xf]
        %v1176 = vld [vmem:[#allocation5 + $0x2c] sm:$0xf]
        %v1177 = vld [vmem:[#allocation5 + $0x30] sm:$0xf]
        %v1178 = vld [vmem:[#allocation5 + $0x34] sm:$0xf]
        %v1179 = vld [vmem:[#allocation5 + $0x38] sm:$0xf]
        %v1180 = vld [vmem:[#allocation5 + $0x3c] sm:$0xf]
        %v1181 = vld [vmem:[%s6] sm:$0x1]
        %v1183 = vperm.slane %v1181, 0
        %v1201 = vunpack.c.l.b16 %v1165
        %v1202 = vunpack.c.l.b16 %v1166
        %v1203 = vunpack.c.l.b16 %v1167
        %v1204 = vunpack.c.l.b16 %v1168
        %v1205 = vunpack.c.l.b16 %v1169
        %v1206 = vunpack.c.l.b16 %v1170
        %v1207 = vunpack.c.l.b16 %v1171
        %v1208 = vunpack.c.l.b16 %v1172
        %v1209 = vunpack.c.l.b16 %v1173
        %v1210 = vunpack.c.l.b16 %v1174
        %v1211 = vunpack.c.l.b16 %v1175
        %v1212 = vunpack.c.l.b16 %v1176
        %v1213 = vunpack.c.l.b16 %v1177
        %v1214 = vunpack.c.l.b16 %v1178
        %v1215 = vunpack.c.l.b16 %v1179
        %v1216 = vunpack.c.l.b16 %v1180
        %v1217 = vpack.c.b16 %v1202, %v1201
        %v1218 = vpack.c.b16 %v1204, %v1203
        %v1219 = vpack.c.b16 %v1206, %v1205
        %v1220 = vpack.c.b16 %v1208, %v1207
        %v1221 = vpack.c.b16 %v1210, %v1209
        %v1222 = vpack.c.b16 %v1212, %v1211
        %v1223 = vpack.c.b16 %v1214, %v1213
        %v1224 = vpack.c.b16 %v1216, %v1215
        %1233 = vmatpush.bf16.msra.mxu0 %v1224
        %1234 = vmatpush.bf16.msra.mxu0 %v1223
        %1235 = vmatpush.bf16.msra.mxu0 %v1222
        %1236 = vmatpush.bf16.msra.mxu0 %v1221
        %1237 = vmatpush.bf16.msra.mxu0 %v1220
        %1238 = vmatpush.bf16.msra.mxu0 %v1219
        %1239 = vmatpush.bf16.msra.mxu0 %v1218
        %1240 = vmatpush.bf16.msra.mxu0 %v1217
        %1241 = vmatmul.bf16.gmra.mxu0 %v1164
        %v1242 = vpop.f32.mrf.mxu0
        %v1243 = vadd.f32 %v1183, %v1242
        %v1244 = vpop.f32.mrf.mxu0
        %1245 = vdwg.mxu0
        %v1246 = vmul.f32 %v1243, 0.2
        %v1247 = vmax.f32 %v1243, %v1246
        %v1248 = vpack.c.bf16 %v1247, %v1247
        %v1249 = vld [vmem:[%s7] sm:$0xf]
        %v1250 = vld [vmem:[%s7 + $0x4] sm:$0xf]
        %v1251 = vld [vmem:[%s7 + $0x8] sm:$0xf]
        %v1252 = vld [vmem:[%s7 + $0xc] sm:$0xf]
        %v1253 = vld [vmem:[%s7 + $0x10] sm:$0xf]
        %v1254 = vld [vmem:[%s7 + $0x14] sm:$0xf]
        %v1255 = vld [vmem:[%s7 + $0x18] sm:$0xf]
        %v1256 = vld [vmem:[%s7 + $0x1c] sm:$0xf]
        %v1257 = vld [vmem:[%s7 + $0x20] sm:$0xf]
        %v1258 = vld [vmem:[%s7 + $0x24] sm:$0xf]
        %v1259 = vld [vmem:[%s7 + $0x28] sm:$0xf]
        %v1260 = vld [vmem:[%s7 + $0x2c] sm:$0xf]
        %v1261 = vld [vmem:[%s7 + $0x30] sm:$0xf]
        %v1262 = vld [vmem:[%s7 + $0x34] sm:$0xf]
        %v1263 = vld [vmem:[%s7 + $0x38] sm:$0xf]
        %v1264 = vld [vmem:[%s7 + $0x3c] sm:$0xf]
        %v1265 = vld [vmem:[%s8] sm:$0x1]
        %v1267 = vperm.slane %v1265, 0
        %v1285 = vunpack.c.l.b16 %v1249
        %v1286 = vunpack.c.l.b16 %v1250
        %v1287 = vunpack.c.l.b16 %v1251
        %v1288 = vunpack.c.l.b16 %v1252
        %v1289 = vunpack.c.l.b16 %v1253
        %v1290 = vunpack.c.l.b16 %v1254
        %v1291 = vunpack.c.l.b16 %v1255
        %v1292 = vunpack.c.l.b16 %v1256
        %v1293 = vunpack.c.l.b16 %v1257
        %v1294 = vunpack.c.l.b16 %v1258
        %v1295 = vunpack.c.l.b16 %v1259
        %v1296 = vunpack.c.l.b16 %v1260
        %v1297 = vunpack.c.l.b16 %v1261
        %v1298 = vunpack.c.l.b16 %v1262
        %v1299 = vunpack.c.l.b16 %v1263
        %v1300 = vunpack.c.l.b16 %v1264
        %v1301 = vpack.c.b16 %v1286, %v1285
        %v1302 = vpack.c.b16 %v1288, %v1287
        %v1303 = vpack.c.b16 %v1290, %v1289
        %v1304 = vpack.c.b16 %v1292, %v1291
        %v1305 = vpack.c.b16 %v1294, %v1293
        %v1306 = vpack.c.b16 %v1296, %v1295
        %v1307 = vpack.c.b16 %v1298, %v1297
        %v1308 = vpack.c.b16 %v1300, %v1299
        %1317 = vmatpush.bf16.msra.mxu0 %v1308
        %1318 = vmatpush.bf16.msra.mxu0 %v1307
        %1319 = vmatpush.bf16.msra.mxu0 %v1306
        %1320 = vmatpush.bf16.msra.mxu0 %v1305
        %1321 = vmatpush.bf16.msra.mxu0 %v1304
        %1322 = vmatpush.bf16.msra.mxu0 %v1303
        %1323 = vmatpush.bf16.msra.mxu0 %v1302
        %1324 = vmatpush.bf16.msra.mxu0 %v1301
        %1325 = vmatmul.bf16.gmra.mxu0 %v1248
        %v1326 = vpop.f32.mrf.mxu0
        %v1327 = vadd.f32 %v1267, %v1326
        %v1328 = vpop.f32.mrf.mxu0
        %1329 = vdwg.mxu0
        %v1330 = vmul.f32 %v1327, 0.2
        %v1331 = vmax.f32 %v1327, %v1330
        %v1332 = vpack.c.bf16 %v1331, %v1331
        %v1333 = vld [vmem:[%s9] sm:$0xf]
        %v1334 = vld [vmem:[%s9 + $0x4] sm:$0xf]
        %v1335 = vld [vmem:[%s9 + $0x8] sm:$0xf]
        %v1336 = vld [vmem:[%s9 + $0xc] sm:$0xf]
        %v1337 = vld [vmem:[%s9 + $0x10] sm:$0xf]
        %v1338 = vld [vmem:[%s9 + $0x14] sm:$0xf]
        %v1339 = vld [vmem:[%s9 + $0x18] sm:$0xf]
        %v1340 = vld [vmem:[%s9 + $0x1c] sm:$0xf]
        %v1341 = vld [vmem:[%s10] sm:$0x1]
        %v1343 = vperm.slane %v1341, 0
        %v1353 = vunpack.c.l.b16 %v1333
        %v1354 = vunpack.c.l.b16 %v1334
        %v1355 = vunpack.c.l.b16 %v1335
        %v1356 = vunpack.c.l.b16 %v1336
        %v1357 = vunpack.c.l.b16 %v1337
        %v1358 = vunpack.c.l.b16 %v1338
        %v1359 = vunpack.c.l.b16 %v1339
        %v1360 = vunpack.c.l.b16 %v1340
        %v1361 = vpack.c.b16 %v1354, %v1353
        %v1362 = vpack.c.b16 %v1356, %v1355
        %v1363 = vpack.c.b16 %v1358, %v1357
        %v1364 = vpack.c.b16 %v1360, %v1359
        %vm1369 = vcmask 523264
        %v1371 = vsel %vm1369, %v1332, 0
        %1373 = vmatpush.bf16.msra.mxu0 0
        %1374 = vmatpush.bf16.msra.mxu0 0
        %1375 = vmatpush.bf16.msra.mxu0 0
        %1376 = vmatpush.bf16.msra.mxu0 0
        %1377 = vmatpush.bf16.msra.mxu0 %v1364
        %1378 = vmatpush.bf16.msra.mxu0 %v1363
        %1379 = vmatpush.bf16.msra.mxu0 %v1362
        %1380 = vmatpush.bf16.msra.mxu0 %v1361
        %1381 = vmatmul.bf16.gmra.mxu0 %v1371
        %v1382 = vpop.f32.mrf.mxu0
        %v1383 = vadd.f32 %v1343, %v1382
        %v1384 = vpop.f32.mrf.mxu0
        %1385 = vdwg.mxu0
        %v1386 = vmul.f32 %v1383, 0.02
        %v1387 = vmax.f32 %v1383, %v1386
        %v1388 = vpack.c.bf16 %v1387, %v1387
        %v1389 = vld [vmem:[%s11] sm:$0xf]
        %v1390 = vld [vmem:[%s11 + $0x4] sm:$0xf]
        %v1391 = vld [vmem:[%s11 + $0x8] sm:$0xf]
        %v1392 = vld [vmem:[%s11 + $0xc] sm:$0xf]
        %v1393 = vld [vmem:[%s11 + $0x10] sm:$0xf]
        %v1394 = vld [vmem:[%s11 + $0x14] sm:$0xf]
        %v1395 = vld [vmem:[%s11 + $0x18] sm:$0xf]
        %v1396 = vld [vmem:[%s11 + $0x1c] sm:$0xf]
        %v1397 = vld [vmem:[%s11 + $0x20] sm:$0xf]
        %v1398 = vld [vmem:[%s11 + $0x24] sm:$0xf]
        %v1399 = vld [vmem:[%s11 + $0x28] sm:$0xf]
        %v1400 = vld [vmem:[%s11 + $0x2c] sm:$0xf]
        %v1401 = vld [vmem:[%s11 + $0x30] sm:$0xf]
        %v1402 = vld [vmem:[%s11 + $0x34] sm:$0xf]
        %v1403 = vld [vmem:[%s11 + $0x38] sm:$0xf]
        %v1404 = vld [vmem:[%s11 + $0x3c] sm:$0xf]
        %v1405 = vld [vmem:[%s12] sm:$0x1]
        %v1407 = vperm.slane %v1405, 0
        %v1425 = vunpack.c.l.b16 %v1389
        %v1426 = vunpack.c.l.b16 %v1390
        %v1427 = vunpack.c.l.b16 %v1391
        %v1428 = vunpack.c.l.b16 %v1392
        %v1429 = vunpack.c.l.b16 %v1393
        %v1430 = vunpack.c.l.b16 %v1394
        %v1431 = vunpack.c.l.b16 %v1395
        %v1432 = vunpack.c.l.b16 %v1396
        %v1433 = vunpack.c.l.b16 %v1397
        %v1434 = vunpack.c.l.b16 %v1398
        %v1435 = vunpack.c.l.b16 %v1399
        %v1436 = vunpack.c.l.b16 %v1400
        %v1437 = vunpack.c.l.b16 %v1401
        %v1438 = vunpack.c.l.b16 %v1402
        %v1439 = vunpack.c.l.b16 %v1403
        %v1440 = vunpack.c.l.b16 %v1404
        %v1441 = vpack.c.b16 %v1426, %v1425
        %v1442 = vpack.c.b16 %v1428, %v1427
        %v1443 = vpack.c.b16 %v1430, %v1429
        %v1444 = vpack.c.b16 %v1432, %v1431
        %v1445 = vpack.c.b16 %v1434, %v1433
        %v1446 = vpack.c.b16 %v1436, %v1435
        %v1447 = vpack.c.b16 %v1438, %v1437
        %v1448 = vpack.c.b16 %v1440, %v1439
        %1457 = vmatpush.bf16.msra.mxu0 %v1448
        %1458 = vmatpush.bf16.msra.mxu0 %v1447
        %1459 = vmatpush.bf16.msra.mxu0 %v1446
        %1460 = vmatpush.bf16.msra.mxu0 %v1445
        %1461 = vmatpush.bf16.msra.mxu0 %v1444
        %1462 = vmatpush.bf16.msra.mxu0 %v1443
        %1463 = vmatpush.bf16.msra.mxu0 %v1442
        %1464 = vmatpush.bf16.msra.mxu0 %v1441
        %1465 = vmatmul.bf16.gmra.mxu0 %v1388
        %v1466 = vpop.f32.mrf.mxu0
        %v1467 = vadd.f32 %v1407, %v1466
        %v1468 = vpop.f32.mrf.mxu0
        %1469 = vdwg.mxu0
        %v1470 = vmul.f32 %v1467, 0.02
        %v1471 = vmax.f32 %v1467, %v1470
        %v1472 = vpack.c.bf16 %v1471, %v1471
        %v1473 = vld [vmem:[%s13] sm:$0xf]
        %v1474 = vld [vmem:[%s13 + $0x4] sm:$0xf]
        %v1475 = vld [vmem:[%s13 + $0x8] sm:$0xf]
        %v1476 = vld [vmem:[%s13 + $0xc] sm:$0xf]
        %v1477 = vld [vmem:[%s13 + $0x10] sm:$0xf]
        %v1478 = vld [vmem:[%s13 + $0x14] sm:$0xf]
        %v1479 = vld [vmem:[%s13 + $0x18] sm:$0xf]
        %v1480 = vld [vmem:[%s13 + $0x1c] sm:$0xf]
        %v1481 = vld [vmem:[%s14] sm:$0x1]
        %v1483 = vperm.slane %v1481, 0
        %v1493 = vunpack.c.l.b16 %v1473
        %v1494 = vunpack.c.l.b16 %v1474
        %v1495 = vunpack.c.l.b16 %v1475
        %v1496 = vunpack.c.l.b16 %v1476
        %v1497 = vunpack.c.l.b16 %v1477
        %v1498 = vunpack.c.l.b16 %v1478
        %v1499 = vunpack.c.l.b16 %v1479
        %v1500 = vunpack.c.l.b16 %v1480
        %v1501 = vpack.c.b16 %v1494, %v1493
        %v1502 = vpack.c.b16 %v1496, %v1495
        %v1503 = vpack.c.b16 %v1498, %v1497
        %v1504 = vpack.c.b16 %v1500, %v1499
        %v1510 = vsel %vm1369, %v1472, 0
        %1512 = vmatpush.bf16.msra.mxu0 0
        %1513 = vmatpush.bf16.msra.mxu0 0
        %1514 = vmatpush.bf16.msra.mxu0 0
        %1515 = vmatpush.bf16.msra.mxu0 0
        %1516 = vmatpush.bf16.msra.mxu0 %v1504
        %1517 = vmatpush.bf16.msra.mxu0 %v1503
        %1518 = vmatpush.bf16.msra.mxu0 %v1502
        %1519 = vmatpush.bf16.msra.mxu0 %v1501
        %1520 = vmatmul.bf16.gmra.mxu0 %v1510
        %v1521 = vpop.f32.mrf.mxu0
        %v1522 = vadd.f32 %v1483, %v1521
        %v1523 = vpop.f32.mrf.mxu0
        %1524 = vdwg.mxu0
        %v1525 = vtanh.pop %v1522
        %vm1526 = vcmask 261120
        %1527 = vst.msk [vmem:[%s521] sm:$0xff] %vm1526, %v1525
        %s1528 = sand.u32 %s359, 1
        %s1529 = scalar_lea.sflag [#allocation4], %s1528
        %s1530 = sand.u32 %s359, 1
        %s1531 = smul.addr %s1530, 8
        %s1532 = scalar_lea.vmem [#allocation7], %s1531
        // Predicated region
        $region89: #{tpu_custom_call.1} parent=79 // pred_check
          %p1533 = pneg %p369
        $region90: #{tpu_custom_call.1} parent=79 // pred_check_branch
          %1535 = sbr.rel (%p1533) target = $region92
        $region91: #{tpu_custom_call.1} parent=79 // pred_region
          %1537 = vsyncadd %s1529, 0
          %s1538 = smul.addr %s31, 8
          %s1539 = scalar_lea.hbm %s15, %s1538
          %s1541 = sshll.u32 %s1532, 4
          %s1542 = int_to_ptr.vmem [resolvable:$true] %s1541
          %s1543 = sshll.u32 %s1539, 4
          %s1544 = int_to_ptr.hbm [resolvable:$true] %s1543
          %1546 = dma.vmem_to_hbm [thread:$0]  %s1542, 128, %s1544, %s1529
        $region92: #{tpu_custom_call.1} parent=79 // pred_fallthru
          _
      $region80: #{tpu_custom_call.1} parent=5 // pred_fallthru
        _
      %p1547 = scmp.le.s32.totalorder 2, %s26
      // Predicated region
      $region93: #{tpu_custom_call.1} parent=5 // pred_check
        %p1548 = pneg %p1547
      $region94: #{tpu_custom_call.1} parent=5 // pred_check_branch
        %1550 = sbr.rel (%p1548) target = $region96
      $region95: #{tpu_custom_call.1} parent=5 // pred_region
        %s1551 = ssub.s32 %s26, 2
        // Predicated region
        $region97: #{tpu_custom_call.1} parent=95 // pred_check
          %p1552 = pneg %p375
        $region98: #{tpu_custom_call.1} parent=95 // pred_check_branch
          %1554 = sbr.rel (%p1552) target = $region100
        $region99: #{tpu_custom_call.1} parent=95 // pred_region
          %s1555 = sand.u32 %s360, 1
          %s1556 = scalar_lea.sflag [#allocation4], %s1555
          %s1557 = sand.u32 %s360, 1
          %s1558 = smul.addr %s1557, 8
          %s1559 = scalar_lea.vmem [#allocation7], %s1558
          %1561 = dma.done %s1556, 128
        $region100: #{tpu_custom_call.1} parent=95 // pred_fallthru
          _
      $region96: #{tpu_custom_call.1} parent=5 // pred_fallthru
        _
    $region6: #{tpu_custom_call.1} parent=1 // loop_footer
      %s30 = sadd.s32 1, %s26
    $region7: #{tpu_custom_call.1} parent=1 // loop_footer_branch
      %25 = sbr.rel target = $region3
    $region8: #{tpu_custom_call.1} parent=1 // loop_exit
      _
    %1562 = vsyncpa [#allocation3], 1
    %s1563 = scalar_lea.sflag [#allocation3], 1
    %1564 = vsyncpa %s1563, 1
    %1565 = vsyncpa [#allocation6], 1
    %1566 = vsyncpa [#allocation4], 1
    %s1567 = scalar_lea.sflag [#allocation4], 1
    %1568 = vsyncpa %s1567, 1

</llo_original>
